<compile_context>
chip_gen: v7x
topology: tpu7x:2x2x1
jax: 0.10.0
libtpu: 0.0.40
codegen_flags: <defaults>
</compile_context>

<pallas_src>
import functools

import jax
import jax.numpy as jnp
from jax.experimental import pallas as pl
from jax.experimental.pallas import tpu as pltpu


TILE_B_MAX = 1024  # batch rows per grid step (cap); sweep ~512 (v5e) .. 2048 (v6e)


def _cdiv(a: int, b: int) -> int:
    return -(-a // b)


def _round_up(n: int, m: int) -> int:
    return ((n + m - 1) // m) * m


def decoder_kernel(alpha_ref,              # SMEM (3,) f32 PReLU slopes
                   x_ref,                  # VMEM (tile_b, d_in) bf16
                   w1_ref, b1_ref,
                   w2_ref, b2_ref,
                   w3_ref, b3_ref,
                   w4_ref, b4_ref,
                   o_ref):                 # VMEM (tile_b, d_out) f32
    """Fused MLP decoder: 4 MXU matmuls + 3 PReLU for one batch tile."""

    def linear(h_bf16, w_ref, b_ref):
        # bf16 operands on the MXU, f32 accumulation, f32 bias add.
        return jnp.dot(h_bf16, w_ref[...],
                       preferred_element_type=jnp.float32) + b_ref[...]

    def prelu(h, a):
        # a is a scalar slope read from SMEM; elementwise math stays f32.
        return jnp.where(h >= 0, h, a * h)

    # Layer 1 has K=8 (tiny MXU K); the MXU has slack here so it stays a dot.
    h = prelu(linear(x_ref[...], w1_ref, b1_ref), alpha_ref[0])
    h = prelu(linear(h.astype(jnp.bfloat16), w2_ref, b2_ref), alpha_ref[1])
    h = prelu(linear(h.astype(jnp.bfloat16), w3_ref, b3_ref), alpha_ref[2])
    h = linear(h.astype(jnp.bfloat16), w4_ref, b4_ref)
    o_ref[...] = h.astype(o_ref.dtype)


def init_decoder_params(key, input_size: int, output_size: int):
    """PyTorch-default init: U(-1/sqrt(fan_in), 1/sqrt(fan_in)); PReLU slope 0.25.

    Weights are stored as (in_features, out_features) so y = x @ W + b
    (== PyTorch's y = x @ W_pt.T + b).
    """
    dims = [(output_size, 128), (128, 256), (256, 512), (512, input_size)]
    params = {}
    keys = jax.random.split(key, 2 * len(dims))
    for i, (fan_in, fan_out) in enumerate(dims):
        bound = 1.0 / float(fan_in) ** 0.5
        params[f"w{i + 1}"] = jax.random.uniform(
            keys[2 * i], (fan_in, fan_out), jnp.float32, -bound, bound)
        params[f"b{i + 1}"] = jax.random.uniform(
            keys[2 * i + 1], (1, fan_out), jnp.float32, -bound, bound)
    for i in range(3):
        params[f"a{i + 1}"] = jnp.asarray(0.25, jnp.float32)
    return params


@functools.partial(jax.jit, static_argnames=("tile_cap",))
def decoder_forward(x, params, *, tile_cap: int = TILE_B_MAX):
    batch, in_feat = x.shape
    out_feat = params["w4"].shape[1]

    # --- Batch tiling ---------------------------------------------------
    # >= 2 grid steps whenever batch > 16 rows (v7x megacore sharding), and
    # tile_b sized from ceil(batch / n_steps) so padding stays tiny even for
    # awkward batch sizes. tile_b is a multiple of 16 (bf16 sublane packing).
    n_steps = max(2, _cdiv(batch, tile_cap))
    tile_b = _round_up(_cdiv(batch, n_steps), 16)
    n_steps = _cdiv(batch, tile_b)          # may collapse to 1 for tiny batches
    padded_b = tile_b * n_steps

    # Pre-cast x to bf16 (halves input HBM traffic, removes an in-kernel cast).
    x = x.astype(jnp.bfloat16)
    if padded_b != batch:
        x = jnp.pad(x, ((0, padded_b - batch), (0, 0)))

    # bf16 weights for the MXU; biases stay f32 (added to the f32 accumulator).
    w1 = params["w1"].astype(jnp.bfloat16)
    w2 = params["w2"].astype(jnp.bfloat16)
    w3 = params["w3"].astype(jnp.bfloat16)
    w4 = params["w4"].astype(jnp.bfloat16)
    b1, b2, b3, b4 = params["b1"], params["b2"], params["b3"], params["b4"]

    # All three PReLU slopes in one tiny SMEM array.
    alphas = jnp.stack(
        [params["a1"], params["a2"], params["a3"]]).astype(jnp.float32)

    def const2d(arr):
        # Whole-array VMEM block, same block every grid step -> loaded once.
        return pl.BlockSpec(arr.shape, lambda i: (0, 0))

    out = pl.pallas_call(
        decoder_kernel,
        # No lane-padding of the output: last dim == full array dim (legal),
        # so the HBM write stream carries no fabricated columns.
        out_shape=jax.ShapeDtypeStruct((padded_b, out_feat), jnp.float32),
        grid=(n_steps,),
        in_specs=[
            pl.BlockSpec(memory_space=pltpu.MemorySpace.SMEM),      # alphas
            pl.BlockSpec((tile_b, in_feat), lambda i: (i, 0)),      # x tile
            const2d(w1), const2d(b1),
            const2d(w2), const2d(b2),
            const2d(w3), const2d(b3),
            const2d(w4), const2d(b4),
        ],
        out_specs=pl.BlockSpec((tile_b, out_feat), lambda i: (i, 0)),
        compiler_params=pltpu.CompilerParams(
            # Batch steps are independent -> megacore-shardable on v7x.
            dimension_semantics=("parallel",),
            # Explicit limit: raises v5e's 16 MiB default, matches v6e/v7x
            # defaults, and stays well under v7x's 64 MiB physical VMEM.
            vmem_limit_bytes=32 * 1024 * 1024,
        ),
    )(alphas, x, w1, b1, w2, b2, w3, b3, w4, b4)

    if padded_b != batch:
        out = out[:batch]
    return out


def decoder_reference_bf16(x, params):
    """Pure-JAX reference using the same bf16-operand / f32-accumulate path."""
    def prelu(h, a):
        return jnp.where(h >= 0, h, a * h)

    def linear(h, w, b):
        return jnp.dot(h.astype(jnp.bfloat16), w.astype(jnp.bfloat16),
                       preferred_element_type=jnp.float32) + b

    h = x.astype(jnp.float32)
    h = prelu(linear(h, params["w1"], params["b1"]), params["a1"])
    h = prelu(linear(h, params["w2"], params["b2"]), params["a2"])
    h = prelu(linear(h, params["w3"], params["b3"]), params["a3"])
    return linear(h, params["w4"], params["b4"])


def decoder_reference_f32(x, params):
    """All-f32 reference (matches the PyTorch module's numerics)."""
    def prelu(h, a):
        return jnp.where(h >= 0, h, a * h)

    h = x.astype(jnp.float32)
    h = prelu(jnp.dot(h, params["w1"]) + params["b1"], params["a1"])
    h = prelu(jnp.dot(h, params["w2"]) + params["b2"], params["a2"])
    h = prelu(jnp.dot(h, params["w3"]) + params["b3"], params["a3"])
    return jnp.dot(h, params["w4"]) + params["b4"]


if __name__ == "__main__":
    # Encoder was EncoderNetwork(input_size=32, output_size=8); the decoder
    # therefore maps (B, 8) -> (B, 32). batch=300 exercises the 2-step batch
    # grid (tile_b=160, 320 padded rows) plus the tail slice, while staying
    # tiny.
    input_size, output_size, batch = 32, 8, 300

    key = jax.random.PRNGKey(0)
    k_params, k_x = jax.random.split(key)
    params = init_decoder_params(k_params, input_size, output_size)
    x = jax.random.normal(k_x, (batch, output_size), jnp.float32)

    out = jax.block_until_ready(decoder_forward(x, params))
    assert out.shape == (batch, input_size)

    # Tight check against the numerics-matched (bf16-operand) reference.
    ref_bf16 = decoder_reference_bf16(x, params)
    assert jnp.allclose(out, ref_bf16, atol=2e-3, rtol=2e-3), float(
        jnp.max(jnp.abs(out - ref_bf16)))

    # Loose check against the true f32 PyTorch-equivalent reference: the bf16
    # MXU path deviates at the ~1e-2 relative level (acceptable for inference).
    ref_f32 = decoder_reference_f32(x, params)
    assert jnp.allclose(out, ref_f32, atol=5e-2, rtol=5e-2), float(
        jnp.max(jnp.abs(out - ref_f32)))

    print("KERNEL_OK")
</pallas_src>

<mosaic_0001>
module attributes {stable_mosaic.version = 11 : i64} {
  func.func @decoder_kernel(%arg0: i32, %arg1: memref<3xf32, #tpu.memory_space<smem>>, %arg2: memref<160x8xbf16, #tpu.memory_space<vmem>>, %arg3: memref<8x128xbf16, #tpu.memory_space<vmem>>, %arg4: memref<1x128xf32, #tpu.memory_space<vmem>>, %arg5: memref<128x256xbf16, #tpu.memory_space<vmem>>, %arg6: memref<1x256xf32, #tpu.memory_space<vmem>>, %arg7: memref<256x512xbf16, #tpu.memory_space<vmem>>, %arg8: memref<1x512xf32, #tpu.memory_space<vmem>>, %arg9: memref<512x32xbf16, #tpu.memory_space<vmem>>, %arg10: memref<1x32xf32, #tpu.memory_space<vmem>>, %arg11: memref<160x32xf32, #tpu.memory_space<vmem>>) attributes {dimension_semantics = [#tpu.dimension_semantics<parallel>], iteration_bounds = array<i64: 2>, scalar_prefetch = 0 : i64, scratch_operands = 0 : i64, tpu.core_type = #tpu.core_type<tc>, window_params = [{transform_indices = @transform_0, window_bounds = array<i64: 3>}, {transform_indices = @transform_1, window_bounds = array<i64: 160, 8>}, {pipeline_mode = #tpu.pipeline_mode<synchronous>, transform_indices = @transform_2, window_bounds = array<i64: 8, 128>}, {pipeline_mode = #tpu.pipeline_mode<synchronous>, transform_indices = @transform_3, window_bounds = array<i64: 1, 128>}, {pipeline_mode = #tpu.pipeline_mode<synchronous>, transform_indices = @transform_4, window_bounds = array<i64: 128, 256>}, {pipeline_mode = #tpu.pipeline_mode<synchronous>, transform_indices = @transform_5, window_bounds = array<i64: 1, 256>}, {pipeline_mode = #tpu.pipeline_mode<synchronous>, transform_indices = @transform_6, window_bounds = array<i64: 256, 512>}, {pipeline_mode = #tpu.pipeline_mode<synchronous>, transform_indices = @transform_7, window_bounds = array<i64: 1, 512>}, {pipeline_mode = #tpu.pipeline_mode<synchronous>, transform_indices = @transform_8, window_bounds = array<i64: 512, 32>}, {pipeline_mode = #tpu.pipeline_mode<synchronous>, transform_indices = @transform_9, window_bounds = array<i64: 1, 32>}, {transform_indices = @transform_10, window_bounds = array<i64: 160, 32>}]} {
    %c0 = arith.constant 0 : index
    %c0_0 = arith.constant 0 : index
    %0 = vector.load %arg2[%c0, %c0_0] : memref<160x8xbf16, #tpu.memory_space<vmem>>, vector<160x8xbf16>
    %c0_1 = arith.constant 0 : index
    %c0_2 = arith.constant 0 : index
    %1 = vector.load %arg3[%c0_1, %c0_2] : memref<8x128xbf16, #tpu.memory_space<vmem>>, vector<8x128xbf16>
    %cst = arith.constant dense<0.000000e+00> : vector<160x128xf32>
    %2 = tpu.matmul %0, %1, %cst {dimension_numbers = #tpu.dot_dimension_numbers<[1], [0], [0], [1], [0, 0, 1, 1], [], []>} : vector<160x8xbf16>, vector<8x128xbf16>, vector<160x128xf32> -> vector<160x128xf32>
    %c0_3 = arith.constant 0 : index
    %c0_4 = arith.constant 0 : index
    %3 = vector.load %arg4[%c0_3, %c0_4] : memref<1x128xf32, #tpu.memory_space<vmem>>, vector<1x128xf32>
    %4 = vector.broadcast %3 : vector<1x128xf32> to vector<160x128xf32>
    %5 = arith.addf %2, %4 : vector<160x128xf32>
    %c0_5 = arith.constant 0 : index
    %6 = memref.load %arg1[%c0_5] : memref<3xf32, #tpu.memory_space<smem>>
    %cst_6 = arith.constant 0.000000e+00 : f32
    %7 = vector.broadcast %cst_6 : f32 to vector<160x128xf32>
    %8 = arith.cmpf oge, %5, %7 : vector<160x128xf32>
    %9 = vector.broadcast %6 : f32 to vector<160x128xf32>
    %10 = arith.mulf %9, %5 : vector<160x128xf32>
    %11 = arith.select %8, %5, %10 : vector<160x128xi1>, vector<160x128xf32>
    %12 = arith.truncf %11 : vector<160x128xf32> to vector<160x128xbf16>
    %c0_7 = arith.constant 0 : index
    %c0_8 = arith.constant 0 : index
    %13 = vector.load %arg5[%c0_7, %c0_8] : memref<128x256xbf16, #tpu.memory_space<vmem>>, vector<128x256xbf16>
    %cst_9 = arith.constant dense<0.000000e+00> : vector<160x256xf32>
    %14 = tpu.matmul %12, %13, %cst_9 {dimension_numbers = #tpu.dot_dimension_numbers<[1], [0], [0], [1], [0, 0, 1, 1], [], []>} : vector<160x128xbf16>, vector<128x256xbf16>, vector<160x256xf32> -> vector<160x256xf32>
    %c0_10 = arith.constant 0 : index
    %c0_11 = arith.constant 0 : index
    %15 = vector.load %arg6[%c0_10, %c0_11] : memref<1x256xf32, #tpu.memory_space<vmem>>, vector<1x256xf32>
    %16 = vector.broadcast %15 : vector<1x256xf32> to vector<160x256xf32>
    %17 = arith.addf %14, %16 : vector<160x256xf32>
    %c1 = arith.constant 1 : index
    %18 = memref.load %arg1[%c1] : memref<3xf32, #tpu.memory_space<smem>>
    %cst_12 = arith.constant 0.000000e+00 : f32
    %19 = vector.broadcast %cst_12 : f32 to vector<160x256xf32>
    %20 = arith.cmpf oge, %17, %19 : vector<160x256xf32>
    %21 = vector.broadcast %18 : f32 to vector<160x256xf32>
    %22 = arith.mulf %21, %17 : vector<160x256xf32>
    %23 = arith.select %20, %17, %22 : vector<160x256xi1>, vector<160x256xf32>
    %24 = arith.truncf %23 : vector<160x256xf32> to vector<160x256xbf16>
    %c0_13 = arith.constant 0 : index
    %c0_14 = arith.constant 0 : index
    %25 = vector.load %arg7[%c0_13, %c0_14] : memref<256x512xbf16, #tpu.memory_space<vmem>>, vector<256x512xbf16>
    %cst_15 = arith.constant dense<0.000000e+00> : vector<160x512xf32>
    %26 = tpu.matmul %24, %25, %cst_15 {dimension_numbers = #tpu.dot_dimension_numbers<[1], [0], [0], [1], [0, 0, 1, 1], [], []>} : vector<160x256xbf16>, vector<256x512xbf16>, vector<160x512xf32> -> vector<160x512xf32>
    %c0_16 = arith.constant 0 : index
    %c0_17 = arith.constant 0 : index
    %27 = vector.load %arg8[%c0_16, %c0_17] : memref<1x512xf32, #tpu.memory_space<vmem>>, vector<1x512xf32>
    %28 = vector.broadcast %27 : vector<1x512xf32> to vector<160x512xf32>
    %29 = arith.addf %26, %28 : vector<160x512xf32>
    %c2 = arith.constant 2 : index
    %30 = memref.load %arg1[%c2] : memref<3xf32, #tpu.memory_space<smem>>
    %cst_18 = arith.constant 0.000000e+00 : f32
    %31 = vector.broadcast %cst_18 : f32 to vector<160x512xf32>
    %32 = arith.cmpf oge, %29, %31 : vector<160x512xf32>
    %33 = vector.broadcast %30 : f32 to vector<160x512xf32>
    %34 = arith.mulf %33, %29 : vector<160x512xf32>
    %35 = arith.select %32, %29, %34 : vector<160x512xi1>, vector<160x512xf32>
    %36 = arith.truncf %35 : vector<160x512xf32> to vector<160x512xbf16>
    %c0_19 = arith.constant 0 : index
    %c0_20 = arith.constant 0 : index
    %37 = vector.load %arg9[%c0_19, %c0_20] : memref<512x32xbf16, #tpu.memory_space<vmem>>, vector<512x32xbf16>
    %cst_21 = arith.constant dense<0.000000e+00> : vector<160x32xf32>
    %38 = tpu.matmul %36, %37, %cst_21 {dimension_numbers = #tpu.dot_dimension_numbers<[1], [0], [0], [1], [0, 0, 1, 1], [], []>} : vector<160x512xbf16>, vector<512x32xbf16>, vector<160x32xf32> -> vector<160x32xf32>
    %c0_22 = arith.constant 0 : index
    %c0_23 = arith.constant 0 : index
    %39 = vector.load %arg10[%c0_22, %c0_23] : memref<1x32xf32, #tpu.memory_space<vmem>>, vector<1x32xf32>
    %40 = vector.broadcast %39 : vector<1x32xf32> to vector<160x32xf32>
    %41 = arith.addf %38, %40 : vector<160x32xf32>
    %c0_24 = arith.constant 0 : index
    %c0_25 = arith.constant 0 : index
    %42 = vector.load %arg11[%c0_24, %c0_25] : memref<160x32xf32, #tpu.memory_space<vmem>>, vector<160x32xf32>
    tpu.vector_store %arg11[%c0_24, %c0_25], %41 {strides = array<i32>} : memref<160x32xf32, #tpu.memory_space<vmem>>, vector<160x32xf32>,
    return
  }
  func.func @transform_0(%arg0: i32) -> i32 {
    %c0_i32 = arith.constant 0 : i32
    %c0_i32_0 = arith.constant 0 : i32
    return %c0_i32 : i32
  }
  func.func @transform_1(%arg0: i32) -> (i32, i32) {
    %c0_i32 = arith.constant 0 : i32
    %c0_i32_0 = arith.constant 0 : i32
    return %arg0, %c0_i32 : i32, i32
  }
  func.func @transform_2(%arg0: i32) -> (i32, i32) {
    %c0_i32 = arith.constant 0 : i32
    %c0_i32_0 = arith.constant 0 : i32
    %c0_i32_1 = arith.constant 0 : i32
    return %c0_i32, %c0_i32_0 : i32, i32
  }
  func.func @transform_3(%arg0: i32) -> (i32, i32) {
    %c0_i32 = arith.constant 0 : i32
    %c0_i32_0 = arith.constant 0 : i32
    %c0_i32_1 = arith.constant 0 : i32
    return %c0_i32, %c0_i32_0 : i32, i32
  }
  func.func @transform_4(%arg0: i32) -> (i32, i32) {
    %c0_i32 = arith.constant 0 : i32
    %c0_i32_0 = arith.constant 0 : i32
    %c0_i32_1 = arith.constant 0 : i32
    return %c0_i32, %c0_i32_0 : i32, i32
  }
  func.func @transform_5(%arg0: i32) -> (i32, i32) {
    %c0_i32 = arith.constant 0 : i32
    %c0_i32_0 = arith.constant 0 : i32
    %c0_i32_1 = arith.constant 0 : i32
    return %c0_i32, %c0_i32_0 : i32, i32
  }
  func.func @transform_6(%arg0: i32) -> (i32, i32) {
    %c0_i32 = arith.constant 0 : i32
    %c0_i32_0 = arith.constant 0 : i32
    %c0_i32_1 = arith.constant 0 : i32
    return %c0_i32, %c0_i32_0 : i32, i32
  }
  func.func @transform_7(%arg0: i32) -> (i32, i32) {
    %c0_i32 = arith.constant 0 : i32
    %c0_i32_0 = arith.constant 0 : i32
    %c0_i32_1 = arith.constant 0 : i32
    return %c0_i32, %c0_i32_0 : i32, i32
  }
  func.func @transform_8(%arg0: i32) -> (i32, i32) {
    %c0_i32 = arith.constant 0 : i32
    %c0_i32_0 = arith.constant 0 : i32
    %c0_i32_1 = arith.constant 0 : i32
    return %c0_i32, %c0_i32_0 : i32, i32
  }
  func.func @transform_9(%arg0: i32) -> (i32, i32) {
    %c0_i32 = arith.constant 0 : i32
    %c0_i32_0 = arith.constant 0 : i32
    %c0_i32_1 = arith.constant 0 : i32
    return %c0_i32, %c0_i32_0 : i32, i32
  }
  func.func @transform_10(%arg0: i32) -> (i32, i32) {
    %c0_i32 = arith.constant 0 : i32
    %c0_i32_0 = arith.constant 0 : i32
    return %arg0, %c0_i32 : i32, i32
  }
}

</mosaic_0001>

<llo_original>
// kernel: decoder_forward.1
$region0: #{decoder_forward.1}
  #allocation0 [shape = 'u32[]', space=smem, size = 0x4, offset = 0x4, fixed_abs, tag = 'smem constant byte address 0x4 - core index']
  #allocation1 [shape = 'u32[144,128]{1,0:T(1,128)}', space=vmem, size = 0x12000, scoped, tag = 'internal scratch']
  %s0 = inlined_call_operand.vmem [shape: f32[3], index: 0, kind: input, shape index: {}]
  %s1 = inlined_call_operand.vmem [shape: bf16[320,8], index: 1, kind: input, shape index: {}]
  %s2 = inlined_call_operand.vmem [shape: bf16[8,128], index: 2, kind: input, shape index: {}]
  %s3 = inlined_call_operand.vmem [shape: f32[1,128], index: 3, kind: input, shape index: {}]
  %s4 = inlined_call_operand.vmem [shape: bf16[128,256], index: 4, kind: input, shape index: {}]
  %s5 = inlined_call_operand.vmem [shape: f32[1,256], index: 5, kind: input, shape index: {}]
  %s6 = inlined_call_operand.vmem [shape: bf16[256,512], index: 6, kind: input, shape index: {}]
  %s7 = inlined_call_operand.vmem [shape: f32[1,512], index: 7, kind: input, shape index: {}]
  %s8 = inlined_call_operand.vmem [shape: bf16[512,32], index: 8, kind: input, shape index: {}]
  %s9 = inlined_call_operand.vmem [shape: f32[1,32], index: 9, kind: input, shape index: {}]
  %s10 = inlined_call_operand.vmem [shape: f32[320,32], index: 10, kind: output, shape index: {}]
  %s11 = sld [smem:[#allocation0]]
  $region77: #{decoder_forward.1} parent=0
    _
  %s13 = ssub.s32 1, %s11
  %s14 = scalar_select 0, %s13, %s11
  $region1: #{decoder_forward.1} parent=0
    #allocation2 [shape = 'u8[512]{0}', space=smem, size = 0x200, scoped, tag = 'input window, operand 0, single buffered']
    #allocation3 [shape = 's32[2]{0}', space=sflag, size = 0x8, scoped, tag = 'scoped memory for decoder_forward.1']
    %15 = vsyncpa [#allocation3], 0
    loop: start=0, step=1, limit=4
    $region2: #{decoder_forward.1} parent=1 // loop_pre_header
      _
    $region3: #{decoder_forward.1} parent=1 // loop_header
      %s17 = sphi 0, %s21
      %p18 = scmp.ge.s32.totalorder %s17, 4
      %s25 = sphi 0, %s25
      %s27 = sphi 0, %s25
      %s28 = sphi 0, %s27
      %s42 = sphi 0, %s28
      %s48 = sphi 0, %s50
      %s51 = sphi 0, %s48
      %s52 = sphi 0, %s51
      %s68 = sphi 0, %s52
      %s72 = sphi 0, %s72
      %s74 = sphi 0, %s72
      %s75 = sphi 0, %s74
      %s89 = sphi 0, %s75
      %s93 = sphi 0, %s93
      %s95 = sphi 0, %s93
      %s96 = sphi 0, %s95
      %s110 = sphi 0, %s96
      %s114 = sphi 0, %s114
      %s116 = sphi 0, %s114
      %s117 = sphi 0, %s116
      %s131 = sphi 0, %s117
      %s135 = sphi 0, %s135
      %s137 = sphi 0, %s135
      %s138 = sphi 0, %s137
      %s152 = sphi 0, %s138
      %s156 = sphi 0, %s156
      %s158 = sphi 0, %s156
      %s159 = sphi 0, %s158
      %s173 = sphi 0, %s159
      %s177 = sphi 0, %s177
      %s179 = sphi 0, %s177
      %s180 = sphi 0, %s179
      %s194 = sphi 0, %s180
      %s198 = sphi 0, %s198
      %s200 = sphi 0, %s198
      %s201 = sphi 0, %s200
      %s215 = sphi 0, %s201
      %s219 = sphi 0, %s219
      %s221 = sphi 0, %s219
      %s222 = sphi 0, %s221
      %s236 = sphi 0, %s222
      %s242 = sphi 0, %s244
      %s245 = sphi 0, %s242
      %s246 = sphi 0, %s245
      %s262 = sphi 0, %s246
    $region4: #{decoder_forward.1} parent=1 // loop_header_branch
      %20 = sbr.rel (%p18) target = $region8
    $region5: #{decoder_forward.1} parent=1 // loop_body
      %s22 = ssub.s32 %s17, 1
      %s23 = ssub.s32 %s17, 2
      %s24 = sadd.s32 %s17, 1
      %s26 = sadd.s32 %s25, 1
      %p29 = scmp.eq.s32.totalorder %s17, 1
      %p30 = scmp.ne.s32.totalorder %s25, %s27
      %p31 = scmp.eq.s32.totalorder %s17, 0
      %p32 = por %p30, %p31
      %p33 = scmp.ne.s32.totalorder %s25, %s27
      %p34 = scmp.eq.s32.totalorder %s22, 1
      %p35 = por %p33, %p34
      %p36 = scmp.ne.s32.totalorder %s27, %s28
      %p37 = scmp.eq.s32.totalorder %s22, 0
      %p38 = por %p36, %p37
      %p39 = scmp.ne.s32.totalorder %s27, %s28
      %p40 = scmp.eq.s32.totalorder %s23, 1
      %p41 = por %p39, %p40
      %p43 = scmp.ne.s32.totalorder %s28, %s42
      %p44 = scmp.eq.s32.totalorder %s23, 0
      %p45 = por %p43, %p44
      %s46 = ssub.s32 %s17, %s24
      %p47 = scmp.eq.s32.totalorder %s46, 0
      %s49 = sadd.s32 %s48, 1
      %s50 = scalar_select %p47, %s48, %s49
      %p53 = pneg %p47
      %p54 = scmp.eq.s32.totalorder %s17, 1
      %p55 = por %p53, %p54
      %p56 = scmp.ne.s32.totalorder %s48, %s51
      %p57 = scmp.eq.s32.totalorder %s17, 0
      %p58 = por %p56, %p57
      %p59 = scmp.ne.s32.totalorder %s48, %s51
      %p60 = scmp.eq.s32.totalorder %s22, 1
      %p61 = por %p59, %p60
      %p62 = scmp.ne.s32.totalorder %s51, %s52
      %p63 = scmp.eq.s32.totalorder %s22, 0
      %p64 = por %p62, %p63
      %p65 = scmp.ne.s32.totalorder %s51, %s52
      %p66 = scmp.eq.s32.totalorder %s23, 1
      %p67 = por %p65, %p66
      %p69 = scmp.ne.s32.totalorder %s52, %s68
      %p70 = scmp.eq.s32.totalorder %s23, 0
      %p71 = por %p69, %p70
      %s73 = sadd.s32 %s72, 1
      %p76 = scmp.eq.s32.totalorder %s17, 1
      %p77 = scmp.ne.s32.totalorder %s72, %s74
      %p78 = scmp.eq.s32.totalorder %s17, 0
      %p79 = por %p77, %p78
      %p80 = scmp.ne.s32.totalorder %s72, %s74
      %p81 = scmp.eq.s32.totalorder %s22, 1
      %p82 = por %p80, %p81
      %p83 = scmp.ne.s32.totalorder %s74, %s75
      %p84 = scmp.eq.s32.totalorder %s22, 0
      %p85 = por %p83, %p84
      %p86 = scmp.ne.s32.totalorder %s74, %s75
      %p87 = scmp.eq.s32.totalorder %s23, 1
      %p88 = por %p86, %p87
      %p90 = scmp.ne.s32.totalorder %s75, %s89
      %p91 = scmp.eq.s32.totalorder %s23, 0
      %p92 = por %p90, %p91
      %s94 = sadd.s32 %s93, 1
      %p97 = scmp.eq.s32.totalorder %s17, 1
      %p98 = scmp.ne.s32.totalorder %s93, %s95
      %p99 = scmp.eq.s32.totalorder %s17, 0
      %p100 = por %p98, %p99
      %p101 = scmp.ne.s32.totalorder %s93, %s95
      %p102 = scmp.eq.s32.totalorder %s22, 1
      %p103 = por %p101, %p102
      %p104 = scmp.ne.s32.totalorder %s95, %s96
      %p105 = scmp.eq.s32.totalorder %s22, 0
      %p106 = por %p104, %p105
      %p107 = scmp.ne.s32.totalorder %s95, %s96
      %p108 = scmp.eq.s32.totalorder %s23, 1
      %p109 = por %p107, %p108
      %p111 = scmp.ne.s32.totalorder %s96, %s110
      %p112 = scmp.eq.s32.totalorder %s23, 0
      %p113 = por %p111, %p112
      %s115 = sadd.s32 %s114, 1
      %p118 = scmp.eq.s32.totalorder %s17, 1
      %p119 = scmp.ne.s32.totalorder %s114, %s116
      %p120 = scmp.eq.s32.totalorder %s17, 0
      %p121 = por %p119, %p120
      %p122 = scmp.ne.s32.totalorder %s114, %s116
      %p123 = scmp.eq.s32.totalorder %s22, 1
      %p124 = por %p122, %p123
      %p125 = scmp.ne.s32.totalorder %s116, %s117
      %p126 = scmp.eq.s32.totalorder %s22, 0
      %p127 = por %p125, %p126
      %p128 = scmp.ne.s32.totalorder %s116, %s117
      %p129 = scmp.eq.s32.totalorder %s23, 1
      %p130 = por %p128, %p129
      %p132 = scmp.ne.s32.totalorder %s117, %s131
      %p133 = scmp.eq.s32.totalorder %s23, 0
      %p134 = por %p132, %p133
      %s136 = sadd.s32 %s135, 1
      %p139 = scmp.eq.s32.totalorder %s17, 1
      %p140 = scmp.ne.s32.totalorder %s135, %s137
      %p141 = scmp.eq.s32.totalorder %s17, 0
      %p142 = por %p140, %p141
      %p143 = scmp.ne.s32.totalorder %s135, %s137
      %p144 = scmp.eq.s32.totalorder %s22, 1
      %p145 = por %p143, %p144
      %p146 = scmp.ne.s32.totalorder %s137, %s138
      %p147 = scmp.eq.s32.totalorder %s22, 0
      %p148 = por %p146, %p147
      %p149 = scmp.ne.s32.totalorder %s137, %s138
      %p150 = scmp.eq.s32.totalorder %s23, 1
      %p151 = por %p149, %p150
      %p153 = scmp.ne.s32.totalorder %s138, %s152
      %p154 = scmp.eq.s32.totalorder %s23, 0
      %p155 = por %p153, %p154
      %s157 = sadd.s32 %s156, 1
      %p160 = scmp.eq.s32.totalorder %s17, 1
      %p161 = scmp.ne.s32.totalorder %s156, %s158
      %p162 = scmp.eq.s32.totalorder %s17, 0
      %p163 = por %p161, %p162
      %p164 = scmp.ne.s32.totalorder %s156, %s158
      %p165 = scmp.eq.s32.totalorder %s22, 1
      %p166 = por %p164, %p165
      %p167 = scmp.ne.s32.totalorder %s158, %s159
      %p168 = scmp.eq.s32.totalorder %s22, 0
      %p169 = por %p167, %p168
      %p170 = scmp.ne.s32.totalorder %s158, %s159
      %p171 = scmp.eq.s32.totalorder %s23, 1
      %p172 = por %p170, %p171
      %p174 = scmp.ne.s32.totalorder %s159, %s173
      %p175 = scmp.eq.s32.totalorder %s23, 0
      %p176 = por %p174, %p175
      %s178 = sadd.s32 %s177, 1
      %p181 = scmp.eq.s32.totalorder %s17, 1
      %p182 = scmp.ne.s32.totalorder %s177, %s179
      %p183 = scmp.eq.s32.totalorder %s17, 0
      %p184 = por %p182, %p183
      %p185 = scmp.ne.s32.totalorder %s177, %s179
      %p186 = scmp.eq.s32.totalorder %s22, 1
      %p187 = por %p185, %p186
      %p188 = scmp.ne.s32.totalorder %s179, %s180
      %p189 = scmp.eq.s32.totalorder %s22, 0
      %p190 = por %p188, %p189
      %p191 = scmp.ne.s32.totalorder %s179, %s180
      %p192 = scmp.eq.s32.totalorder %s23, 1
      %p193 = por %p191, %p192
      %p195 = scmp.ne.s32.totalorder %s180, %s194
      %p196 = scmp.eq.s32.totalorder %s23, 0
      %p197 = por %p195, %p196
      %s199 = sadd.s32 %s198, 1
      %p202 = scmp.eq.s32.totalorder %s17, 1
      %p203 = scmp.ne.s32.totalorder %s198, %s200
      %p204 = scmp.eq.s32.totalorder %s17, 0
      %p205 = por %p203, %p204
      %p206 = scmp.ne.s32.totalorder %s198, %s200
      %p207 = scmp.eq.s32.totalorder %s22, 1
      %p208 = por %p206, %p207
      %p209 = scmp.ne.s32.totalorder %s200, %s201
      %p210 = scmp.eq.s32.totalorder %s22, 0
      %p211 = por %p209, %p210
      %p212 = scmp.ne.s32.totalorder %s200, %s201
      %p213 = scmp.eq.s32.totalorder %s23, 1
      %p214 = por %p212, %p213
      %p216 = scmp.ne.s32.totalorder %s201, %s215
      %p217 = scmp.eq.s32.totalorder %s23, 0
      %p218 = por %p216, %p217
      %s220 = sadd.s32 %s219, 1
      %p223 = scmp.eq.s32.totalorder %s17, 1
      %p224 = scmp.ne.s32.totalorder %s219, %s221
      %p225 = scmp.eq.s32.totalorder %s17, 0
      %p226 = por %p224, %p225
      %p227 = scmp.ne.s32.totalorder %s219, %s221
      %p228 = scmp.eq.s32.totalorder %s22, 1
      %p229 = por %p227, %p228
      %p230 = scmp.ne.s32.totalorder %s221, %s222
      %p231 = scmp.eq.s32.totalorder %s22, 0
      %p232 = por %p230, %p231
      %p233 = scmp.ne.s32.totalorder %s221, %s222
      %p234 = scmp.eq.s32.totalorder %s23, 1
      %p235 = por %p233, %p234
      %p237 = scmp.ne.s32.totalorder %s222, %s236
      %p238 = scmp.eq.s32.totalorder %s23, 0
      %p239 = por %p237, %p238
      %s240 = ssub.s32 %s17, %s24
      %p241 = scmp.eq.s32.totalorder %s240, 0
      %s243 = sadd.s32 %s242, 1
      %s244 = scalar_select %p241, %s242, %s243
      %p247 = pneg %p241
      %p248 = scmp.eq.s32.totalorder %s17, 1
      %p249 = por %p247, %p248
      %p250 = scmp.ne.s32.totalorder %s242, %s245
      %p251 = scmp.eq.s32.totalorder %s17, 0
      %p252 = por %p250, %p251
      %p253 = scmp.ne.s32.totalorder %s242, %s245
      %p254 = scmp.eq.s32.totalorder %s22, 1
      %p255 = por %p253, %p254
      %p256 = scmp.ne.s32.totalorder %s245, %s246
      %p257 = scmp.eq.s32.totalorder %s22, 0
      %p258 = por %p256, %p257
      %p259 = scmp.ne.s32.totalorder %s245, %s246
      %p260 = scmp.eq.s32.totalorder %s23, 1
      %p261 = por %p259, %p260
      %p263 = scmp.ne.s32.totalorder %s246, %s262
      %p264 = scmp.eq.s32.totalorder %s23, 0
      %p265 = por %p263, %p264
      %p266 = scmp.le.s32.totalorder 1, %s17
      %p267 = scmp.lt.s32.totalorder %s17, 3
      %p268 = pnand %p266, %p267
      %p269 = pneg %p268
      // Predicated region
      $region9: #{decoder_forward.1} parent=5 // pred_check
        _
      $region10: #{decoder_forward.1} parent=5 // pred_check_branch
        %271 = sbr.rel (%p268) target = $region12
      $region11: #{decoder_forward.1} parent=5 // pred_region
        %s272 = ssub.s32 %s17, 1
        // Predicated region
        $region13: #{decoder_forward.1} parent=11 // pred_check
          %p273 = pneg %p38
        $region14: #{decoder_forward.1} parent=11 // pred_check_branch
          %275 = sbr.rel (%p273) target = $region16
        $region15: #{decoder_forward.1} parent=11 // pred_region
          %s277 = ssub.s32 16, 16
          %278 = vsyncadd [#allocation3], %s277
          %s280 = sshll.u32 %s0, 4
          %s281 = int_to_ptr.vmem [resolvable:$true] %s280
          %283 = dma.vmem_to_smem %s281, 16, [#allocation2], [#allocation3]
        $region16: #{decoder_forward.1} parent=11 // pred_fallthru
          _
        // Predicated region
        $region17: #{decoder_forward.1} parent=11 // pred_check
          %p284 = pneg %p85
        $region18: #{decoder_forward.1} parent=11 // pred_check_branch
          %286 = sbr.rel (%p284) target = $region20
        $region19: #{decoder_forward.1} parent=11 // pred_region
          _
        $region20: #{decoder_forward.1} parent=11 // pred_fallthru
          _
        // Predicated region
        $region21: #{decoder_forward.1} parent=11 // pred_check
          %p287 = pneg %p106
        $region22: #{decoder_forward.1} parent=11 // pred_check_branch
          %289 = sbr.rel (%p287) target = $region24
        $region23: #{decoder_forward.1} parent=11 // pred_region
          _
        $region24: #{decoder_forward.1} parent=11 // pred_fallthru
          _
        // Predicated region
        $region25: #{decoder_forward.1} parent=11 // pred_check
          %p290 = pneg %p127
        $region26: #{decoder_forward.1} parent=11 // pred_check_branch
          %292 = sbr.rel (%p290) target = $region28
        $region27: #{decoder_forward.1} parent=11 // pred_region
          _
        $region28: #{decoder_forward.1} parent=11 // pred_fallthru
          _
        // Predicated region
        $region29: #{decoder_forward.1} parent=11 // pred_check
          %p293 = pneg %p148
        $region30: #{decoder_forward.1} parent=11 // pred_check_branch
          %295 = sbr.rel (%p293) target = $region32
        $region31: #{decoder_forward.1} parent=11 // pred_region
          _
        $region32: #{decoder_forward.1} parent=11 // pred_fallthru
          _
        // Predicated region
        $region33: #{decoder_forward.1} parent=11 // pred_check
          %p296 = pneg %p169
        $region34: #{decoder_forward.1} parent=11 // pred_check_branch
          %298 = sbr.rel (%p296) target = $region36
        $region35: #{decoder_forward.1} parent=11 // pred_region
          _
        $region36: #{decoder_forward.1} parent=11 // pred_fallthru
          _
        // Predicated region
        $region37: #{decoder_forward.1} parent=11 // pred_check
          %p299 = pneg %p190
        $region38: #{decoder_forward.1} parent=11 // pred_check_branch
          %301 = sbr.rel (%p299) target = $region40
        $region39: #{decoder_forward.1} parent=11 // pred_region
          _
        $region40: #{decoder_forward.1} parent=11 // pred_fallthru
          _
        // Predicated region
        $region41: #{decoder_forward.1} parent=11 // pred_check
          %p302 = pneg %p211
        $region42: #{decoder_forward.1} parent=11 // pred_check_branch
          %304 = sbr.rel (%p302) target = $region44
        $region43: #{decoder_forward.1} parent=11 // pred_region
          _
        $region44: #{decoder_forward.1} parent=11 // pred_fallthru
          _
        // Predicated region
        $region45: #{decoder_forward.1} parent=11 // pred_check
          %p305 = pneg %p232
        $region46: #{decoder_forward.1} parent=11 // pred_check_branch
          %307 = sbr.rel (%p305) target = $region48
        $region47: #{decoder_forward.1} parent=11 // pred_region
          _
        $region48: #{decoder_forward.1} parent=11 // pred_fallthru
          _
      $region12: #{decoder_forward.1} parent=5 // pred_fallthru
        _
      %p308 = scmp.lt.s32.totalorder %s17, 2
      // Predicated region
      $region49: #{decoder_forward.1} parent=5 // pred_check
        %p309 = pneg %p308
      $region50: #{decoder_forward.1} parent=5 // pred_check_branch
        %311 = sbr.rel (%p309) target = $region52
      $region51: #{decoder_forward.1} parent=5 // pred_region
        // Predicated region
        $region53: #{decoder_forward.1} parent=51 // pred_check
          %p312 = pneg %p58
        $region54: #{decoder_forward.1} parent=51 // pred_check_branch
          %314 = sbr.rel (%p312) target = $region56
        $region55: #{decoder_forward.1} parent=51 // pred_region
          %s315 = smul.u32 20, %s17
          %p316 = scmp.lt.s32.totalorder %s315, 39
          %s317 = scalar_select %p316, %s315, 39
          %s318 = smul.addr %s317, 4
          %s319 = scalar_lea.vmem %s1, %s318
          %s320 = smul.u32 20, %s17
        $region56: #{decoder_forward.1} parent=51 // pred_fallthru
          _
      $region52: #{decoder_forward.1} parent=5 // pred_fallthru
        _
      %p321 = scmp.le.s32.totalorder 1, %s17
      %p322 = scmp.lt.s32.totalorder %s17, 3
      %p323 = pnand %p321, %p322
      %p324 = pneg %p323
      // Predicated region
      $region57: #{decoder_forward.1} parent=5 // pred_check
        _
      $region58: #{decoder_forward.1} parent=5 // pred_check_branch
        %326 = sbr.rel (%p323) target = $region60
      $region59: #{decoder_forward.1} parent=5 // pred_region
        %s327 = ssub.s32 %s17, 1
        // Predicated region
        $region61: #{decoder_forward.1} parent=59 // pred_check
          %p328 = pneg %p38
        $region62: #{decoder_forward.1} parent=59 // pred_check_branch
          %330 = sbr.rel (%p328) target = $region64
        $region63: #{decoder_forward.1} parent=59 // pred_region
          %331 = dma.done [#allocation3], 16
        $region64: #{decoder_forward.1} parent=59 // pred_fallthru
          _
        %332 = sfence
        %p333 = pneg %p38
        %p334 = pneg %p35
        %s335 = smul.u32 20, %s22
        %p336 = scmp.lt.s32.totalorder %s335, 39
        %s337 = scalar_select %p336, %s335, 39
        %s338 = smul.addr %s337, 4
        %s339 = scalar_lea.vmem %s1, %s338
        %p340 = pneg %p64
        %p341 = pneg %p61
        %p342 = pneg %p85
        %p343 = pneg %p82
        %p344 = pneg %p106
        %p345 = pneg %p103
        %p346 = pneg %p127
        %p347 = pneg %p124
        %p348 = pneg %p148
        %p349 = pneg %p145
        %p350 = pneg %p169
        %p351 = pneg %p166
        %p352 = pneg %p190
        %p353 = pneg %p187
        %p354 = pneg %p211
        %p355 = pneg %p208
        %p356 = pneg %p232
        %p357 = pneg %p229
        %p358 = pneg %p258
        %p359 = pneg %p255
        %s360 = smul.u32 20, %s22
        %p361 = scmp.lt.s32.totalorder %s360, 39
        %s362 = scalar_select %p361, %s360, 39
        %s363 = smul.addr %s362, 8
        %s364 = scalar_lea.vmem %s10, %s363
        %s365 = smul.u32 20, %s22
        %p366 = scmp.lt.s32.totalorder %s365, 39
        %s367 = scalar_select %p366, %s365, 39
        %s368 = smul.addr %s367, 4
        %s369 = scalar_lea.vmem %s1, %s368
        %s370 = smul.u32 20, %s22
        %s371 = smul.u32 20, %s22
        %p372 = scmp.lt.s32.totalorder %s371, 39
        %s373 = scalar_select %p372, %s371, 39
        %s374 = smul.addr %s373, 8
        %s375 = scalar_lea.vmem %s10, %s374
        %s376 = smul.u32 20, %s22
        %v378 = vld [vmem:[%s369] sm:$0xf]
        %v379 = vld [vmem:[%s369 + $0x4] sm:$0xf]
        %v380 = vld [vmem:[%s369 + $0x8] sm:$0xf]
        %v381 = vld [vmem:[%s369 + $0xc] sm:$0xf]
        %v382 = vld [vmem:[%s369 + $0x10] sm:$0xf]
        %v383 = vld [vmem:[%s369 + $0x14] sm:$0xf]
        %v384 = vld [vmem:[%s369 + $0x18] sm:$0xf]
        %v385 = vld [vmem:[%s369 + $0x1c] sm:$0xf]
        %v386 = vld [vmem:[%s369 + $0x20] sm:$0xf]
        %v387 = vld [vmem:[%s369 + $0x24] sm:$0xf]
        %v388 = vld [vmem:[%s369 + $0x28] sm:$0xf]
        %v389 = vld [vmem:[%s369 + $0x2c] sm:$0xf]
        %v390 = vld [vmem:[%s369 + $0x30] sm:$0xf]
        %v391 = vld [vmem:[%s369 + $0x34] sm:$0xf]
        %v392 = vld [vmem:[%s369 + $0x38] sm:$0xf]
        %v393 = vld [vmem:[%s369 + $0x3c] sm:$0xf]
        %v394 = vld [vmem:[%s369 + $0x40] sm:$0xf]
        %v395 = vld [vmem:[%s369 + $0x44] sm:$0xf]
        %v396 = vld [vmem:[%s369 + $0x48] sm:$0xf]
        %v397 = vld [vmem:[%s369 + $0x4c] sm:$0xf]
        %v398 = vld [vmem:[%s2] sm:$0xf]
        %v399 = vld [vmem:[%s3] sm:$0x1]
        %v401 = vlaneseq
        %v402 = vshrl.u32 %v401, 7
        %v403 = vsub.s32 0, %v402
        %v404 = vrot.slane %v399, %v403
        %v426 = vunpack.c.l.b16 %v378
        %v427 = vunpack.c.l.b16 %v379
        %v428 = vunpack.c.l.b16 %v380
        %v429 = vunpack.c.l.b16 %v381
        %v430 = vunpack.c.l.b16 %v382
        %v431 = vunpack.c.l.b16 %v383
        %v432 = vunpack.c.l.b16 %v384
        %v433 = vunpack.c.l.b16 %v385
        %v434 = vunpack.c.l.b16 %v386
        %v435 = vunpack.c.l.b16 %v387
        %v436 = vunpack.c.l.b16 %v388
        %v437 = vunpack.c.l.b16 %v389
        %v438 = vunpack.c.l.b16 %v390
        %v439 = vunpack.c.l.b16 %v391
        %v440 = vunpack.c.l.b16 %v392
        %v441 = vunpack.c.l.b16 %v393
        %v442 = vunpack.c.l.b16 %v394
        %v443 = vunpack.c.l.b16 %v395
        %v444 = vunpack.c.l.b16 %v396
        %v445 = vunpack.c.l.b16 %v397
        %v446 = vpack.c.b16 %v427, %v426
        %v447 = vpack.c.b16 %v429, %v428
        %v448 = vpack.c.b16 %v431, %v430
        %v449 = vpack.c.b16 %v433, %v432
        %v450 = vpack.c.b16 %v435, %v434
        %v451 = vpack.c.b16 %v437, %v436
        %v452 = vpack.c.b16 %v439, %v438
        %v453 = vpack.c.b16 %v441, %v440
        %v454 = vpack.c.b16 %v443, %v442
        %v455 = vpack.c.b16 %v445, %v444
        %vm456 = vcmask 64512
        %v458 = vsel %vm456, %v446, 0
        %v461 = vsel %vm456, %v447, 0
        %v464 = vsel %vm456, %v448, 0
        %v467 = vsel %vm456, %v449, 0
        %v470 = vsel %vm456, %v450, 0
        %v473 = vsel %vm456, %v451, 0
        %v476 = vsel %vm456, %v452, 0
        %v479 = vsel %vm456, %v453, 0
        %v482 = vsel %vm456, %v454, 0
        %v485 = vsel %vm456, %v455, 0
        %vm487 = vcmask 1043456
        %v489 = vsel %vm487, %v398, 0
        %491 = vmatprep.subr.bf16.mxu0 0
        %492 = vmatpush1.bf16.msra.mxu0 %v489
        %493 = vmatprep.subr.bf16.mxu0 0
        %494 = vmatpush1.bf16.msra.mxu0 0
        %495 = vmatprep.subr.bf16.mxu0 0
        %496 = vmatpush1.bf16.msra.mxu0 0
        %497 = vmatprep.subr.bf16.mxu0 0
        %498 = vmatpush1.bf16.msra.mxu0 0
        %499 = vmatprep.subr.bf16.mxu0 0
        %500 = vmatpush1.bf16.msra.mxu0 0
        %501 = vmatprep.subr.bf16.mxu0 0
        %502 = vmatpush1.bf16.msra.mxu0 0
        %503 = vmatprep.subr.bf16.mxu0 0
        %504 = vmatpush1.bf16.msra.mxu0 0
        %505 = vmatprep.subr.bf16.mxu0 0
        %506 = vmatpush1.bf16.msra.mxu0 0
        %507 = vmatprep.subr.bf16.mxu0 0
        %508 = vmatpush1.bf16.msra.mxu0 0
        %509 = vmatprep.subr.bf16.mxu0 0
        %510 = vmatpush1.bf16.msra.mxu0 0
        %511 = vmatprep.subr.bf16.mxu0 0
        %512 = vmatpush1.bf16.msra.mxu0 0
        %513 = vmatprep.subr.bf16.mxu0 0
        %514 = vmatpush1.bf16.msra.mxu0 0
        %515 = vmatprep.subr.bf16.mxu0 0
        %516 = vmatpush1.bf16.msra.mxu0 0
        %517 = vmatprep.subr.bf16.mxu0 0
        %518 = vmatpush1.bf16.msra.mxu0 0
        %519 = vmatprep.subr.bf16.mxu0 0
        %520 = vmatpush1.bf16.msra.mxu0 0
        %521 = vmatprep.subr.bf16.mxu0 0
        %522 = vmatpush1.bf16.msra.mxu0 0
        %523 = vmatprep.mubr.bf16.mxu0 0
        %524 = vmatmul.mubr.bf16.gmra.mrb[0].mxu0 %v458
        %v525 = vpop.f32.mrb[0].mxu0
        %v526 = vadd.f32 %v404, %v525
        %v527 = vpop.f32.mrb[0].mxu0
        %v528 = vpop.f32.mrb[0].mxu0
        %v529 = vadd.f32 %v404, %v528
        %v530 = vpop.f32.mrb[0].mxu0
        %531 = vmatprep.mubr.bf16.mxu0 0
        %532 = vmatmul.mubr.bf16.gmra.mrb[0].mxu0 %v461
        %v533 = vpop.f32.mrb[0].mxu0
        %v534 = vadd.f32 %v404, %v533
        %v535 = vpop.f32.mrb[0].mxu0
        %v536 = vpop.f32.mrb[0].mxu0
        %v537 = vadd.f32 %v404, %v536
        %v538 = vpop.f32.mrb[0].mxu0
        %539 = vmatprep.mubr.bf16.mxu0 0
        %540 = vmatmul.mubr.bf16.gmra.mrb[0].mxu0 %v464
        %v541 = vpop.f32.mrb[0].mxu0
        %v542 = vadd.f32 %v404, %v541
        %v543 = vpop.f32.mrb[0].mxu0
        %v544 = vpop.f32.mrb[0].mxu0
        %v545 = vadd.f32 %v404, %v544
        %v546 = vpop.f32.mrb[0].mxu0
        %547 = vmatprep.mubr.bf16.mxu0 0
        %548 = vmatmul.mubr.bf16.gmra.mrb[0].mxu0 %v467
        %v549 = vpop.f32.mrb[0].mxu0
        %v550 = vadd.f32 %v404, %v549
        %v551 = vpop.f32.mrb[0].mxu0
        %v552 = vpop.f32.mrb[0].mxu0
        %v553 = vadd.f32 %v404, %v552
        %v554 = vpop.f32.mrb[0].mxu0
        %555 = vmatprep.mubr.bf16.mxu0 0
        %556 = vmatmul.mubr.bf16.gmra.mrb[0].mxu0 %v470
        %v557 = vpop.f32.mrb[0].mxu0
        %v558 = vadd.f32 %v404, %v557
        %v559 = vpop.f32.mrb[0].mxu0
        %v560 = vpop.f32.mrb[0].mxu0
        %v561 = vadd.f32 %v404, %v560
        %v562 = vpop.f32.mrb[0].mxu0
        %563 = vmatprep.mubr.bf16.mxu0 0
        %564 = vmatmul.mubr.bf16.gmra.mrb[0].mxu0 %v473
        %v565 = vpop.f32.mrb[0].mxu0
        %v566 = vadd.f32 %v404, %v565
        %v567 = vpop.f32.mrb[0].mxu0
        %v568 = vpop.f32.mrb[0].mxu0
        %v569 = vadd.f32 %v404, %v568
        %v570 = vpop.f32.mrb[0].mxu0
        %571 = vmatprep.mubr.bf16.mxu0 0
        %572 = vmatmul.mubr.bf16.gmra.mrb[0].mxu0 %v476
        %v573 = vpop.f32.mrb[0].mxu0
        %v574 = vadd.f32 %v404, %v573
        %v575 = vpop.f32.mrb[0].mxu0
        %v576 = vpop.f32.mrb[0].mxu0
        %v577 = vadd.f32 %v404, %v576
        %v578 = vpop.f32.mrb[0].mxu0
        %579 = vmatprep.mubr.bf16.mxu0 0
        %580 = vmatmul.mubr.bf16.gmra.mrb[0].mxu0 %v479
        %v581 = vpop.f32.mrb[0].mxu0
        %v582 = vadd.f32 %v404, %v581
        %v583 = vpop.f32.mrb[0].mxu0
        %v584 = vpop.f32.mrb[0].mxu0
        %v585 = vadd.f32 %v404, %v584
        %v586 = vpop.f32.mrb[0].mxu0
        %587 = vmatprep.mubr.bf16.mxu0 0
        %588 = vmatmul.mubr.bf16.gmra.mrb[0].mxu0 %v482
        %v589 = vpop.f32.mrb[0].mxu0
        %v590 = vadd.f32 %v404, %v589
        %v591 = vpop.f32.mrb[0].mxu0
        %v592 = vpop.f32.mrb[0].mxu0
        %v593 = vadd.f32 %v404, %v592
        %v594 = vpop.f32.mrb[0].mxu0
        %595 = vmatprep.mubr.bf16.mxu0 0
        %596 = vmatmul.mubr.bf16.gmra.mrb[0].mxu0 %v485
        %v597 = vpop.f32.mrb[0].mxu0
        %v598 = vadd.f32 %v404, %v597
        %v599 = vpop.f32.mrb[0].mxu0
        %v600 = vpop.f32.mrb[0].mxu0
        %v601 = vadd.f32 %v404, %v600
        %v602 = vpop.f32.mrb[0].mxu0
        %603 = vdwg.mxu0
        %s604 = sld [smem:[#allocation2]]
        %vm605 = vcmp.ge.f32.partialorder %v526, 0.0
        %vm606 = vcmp.ge.f32.partialorder %v529, 0.0
        %vm607 = vcmp.ge.f32.partialorder %v534, 0.0
        %vm608 = vcmp.ge.f32.partialorder %v537, 0.0
        %vm609 = vcmp.ge.f32.partialorder %v542, 0.0
        %vm610 = vcmp.ge.f32.partialorder %v545, 0.0
        %vm611 = vcmp.ge.f32.partialorder %v550, 0.0
        %vm612 = vcmp.ge.f32.partialorder %v553, 0.0
        %vm613 = vcmp.ge.f32.partialorder %v558, 0.0
        %vm614 = vcmp.ge.f32.partialorder %v561, 0.0
        %vm615 = vcmp.ge.f32.partialorder %v566, 0.0
        %vm616 = vcmp.ge.f32.partialorder %v569, 0.0
        %vm617 = vcmp.ge.f32.partialorder %v574, 0.0
        %vm618 = vcmp.ge.f32.partialorder %v577, 0.0
        %vm619 = vcmp.ge.f32.partialorder %v582, 0.0
        %vm620 = vcmp.ge.f32.partialorder %v585, 0.0
        %vm621 = vcmp.ge.f32.partialorder %v590, 0.0
        %vm622 = vcmp.ge.f32.partialorder %v593, 0.0
        %vm623 = vcmp.ge.f32.partialorder %v598, 0.0
        %vm624 = vcmp.ge.f32.partialorder %v601, 0.0
        %v625 = vstv %s604
        %v626 = vmul.f32 %v625, %v526
        %v627 = vmul.f32 %v625, %v529
        %v628 = vmul.f32 %v625, %v534
        %v629 = vmul.f32 %v625, %v537
        %v630 = vmul.f32 %v625, %v542
        %v631 = vmul.f32 %v625, %v545
        %v632 = vmul.f32 %v625, %v550
        %v633 = vmul.f32 %v625, %v553
        %v634 = vmul.f32 %v625, %v558
        %v635 = vmul.f32 %v625, %v561
        %v636 = vmul.f32 %v625, %v566
        %v637 = vmul.f32 %v625, %v569
        %v638 = vmul.f32 %v625, %v574
        %v639 = vmul.f32 %v625, %v577
        %v640 = vmul.f32 %v625, %v582
        %v641 = vmul.f32 %v625, %v585
        %v642 = vmul.f32 %v625, %v590
        %v643 = vmul.f32 %v625, %v593
        %v644 = vmul.f32 %v625, %v598
        %v645 = vmul.f32 %v625, %v601
        %v646 = vsel %vm605, %v526, %v626
        %v647 = vsel %vm606, %v529, %v627
        %v648 = vsel %vm607, %v534, %v628
        %v649 = vsel %vm608, %v537, %v629
        %v650 = vsel %vm609, %v542, %v630
        %v651 = vsel %vm610, %v545, %v631
        %v652 = vsel %vm611, %v550, %v632
        %v653 = vsel %vm612, %v553, %v633
        %v654 = vsel %vm613, %v558, %v634
        %v655 = vsel %vm614, %v561, %v635
        %v656 = vsel %vm615, %v566, %v636
        %v657 = vsel %vm616, %v569, %v637
        %v658 = vsel %vm617, %v574, %v638
        %v659 = vsel %vm618, %v577, %v639
        %v660 = vsel %vm619, %v582, %v640
        %v661 = vsel %vm620, %v585, %v641
        %v662 = vsel %vm621, %v590, %v642
        %v663 = vsel %vm622, %v593, %v643
        %v664 = vsel %vm623, %v598, %v644
        %v665 = vsel %vm624, %v601, %v645
        %v666 = vpack.c.bf16 %v647, %v646
        %v667 = vpack.c.bf16 %v649, %v648
        %v668 = vpack.c.bf16 %v651, %v650
        %v669 = vpack.c.bf16 %v653, %v652
        %v670 = vpack.c.bf16 %v655, %v654
        %v671 = vpack.c.bf16 %v657, %v656
        %v672 = vpack.c.bf16 %v659, %v658
        %v673 = vpack.c.bf16 %v661, %v660
        %v674 = vpack.c.bf16 %v663, %v662
        %v675 = vpack.c.bf16 %v665, %v664
        %v676 = vld [vmem:[%s4] sm:$0xff]
        %v677 = vld [vmem:[%s4 + $0x8] sm:$0xff]
        %v678 = vld [vmem:[%s4 + $0x10] sm:$0xff]
        %v679 = vld [vmem:[%s4 + $0x18] sm:$0xff]
        %v680 = vld [vmem:[%s4 + $0x20] sm:$0xff]
        %v681 = vld [vmem:[%s4 + $0x28] sm:$0xff]
        %v682 = vld [vmem:[%s4 + $0x30] sm:$0xff]
        %v683 = vld [vmem:[%s4 + $0x38] sm:$0xff]
        %v684 = vld [vmem:[%s4 + $0x40] sm:$0xff]
        %v685 = vld [vmem:[%s4 + $0x48] sm:$0xff]
        %v686 = vld [vmem:[%s4 + $0x50] sm:$0xff]
        %v687 = vld [vmem:[%s4 + $0x58] sm:$0xff]
        %v688 = vld [vmem:[%s4 + $0x60] sm:$0xff]
        %v689 = vld [vmem:[%s4 + $0x68] sm:$0xff]
        %v690 = vld [vmem:[%s4 + $0x70] sm:$0xff]
        %v691 = vld [vmem:[%s4 + $0x78] sm:$0xff]
        %v692 = vld [vmem:[%s5] sm:$0x3]
        %v694 = vlaneseq
        %v695 = vshrl.u32 %v694, 7
        %v696 = vsub.s32 0, %v695
        %v697 = vrot.slane %v692, %v696
        %v698 = vlaneseq
        %v699 = vshrl.u32 %v698, 7
        %v700 = vsub.s32 1, %v699
        %v701 = vrot.slane %v692, %v700
        %v720 = vunpack.c.l.b16 %v676
        %v721 = vunpack.c.h.b16 %v676
        %v722 = vunpack.c.l.b16 %v677
        %v723 = vunpack.c.h.b16 %v677
        %v724 = vunpack.c.l.b16 %v678
        %v725 = vunpack.c.h.b16 %v678
        %v726 = vunpack.c.l.b16 %v679
        %v727 = vunpack.c.h.b16 %v679
        %v728 = vunpack.c.l.b16 %v680
        %v729 = vunpack.c.h.b16 %v680
        %v730 = vunpack.c.l.b16 %v681
        %v731 = vunpack.c.h.b16 %v681
        %v732 = vunpack.c.l.b16 %v682
        %v733 = vunpack.c.h.b16 %v682
        %v734 = vunpack.c.l.b16 %v683
        %v735 = vunpack.c.h.b16 %v683
        %v736 = vunpack.c.l.b16 %v684
        %v737 = vunpack.c.h.b16 %v684
        %v738 = vunpack.c.l.b16 %v685
        %v739 = vunpack.c.h.b16 %v685
        %v740 = vunpack.c.l.b16 %v686
        %v741 = vunpack.c.h.b16 %v686
        %v742 = vunpack.c.l.b16 %v687
        %v743 = vunpack.c.h.b16 %v687
        %v744 = vunpack.c.l.b16 %v688
        %v745 = vunpack.c.h.b16 %v688
        %v746 = vunpack.c.l.b16 %v689
        %v747 = vunpack.c.h.b16 %v689
        %v748 = vunpack.c.l.b16 %v690
        %v749 = vunpack.c.h.b16 %v690
        %v750 = vunpack.c.l.b16 %v691
        %v751 = vunpack.c.h.b16 %v691
        %v752 = vpack.c.b16 %v722, %v720
        %v753 = vpack.c.b16 %v723, %v721
        %v754 = vpack.c.b16 %v726, %v724
        %v755 = vpack.c.b16 %v727, %v725
        %v756 = vpack.c.b16 %v730, %v728
        %v757 = vpack.c.b16 %v731, %v729
        %v758 = vpack.c.b16 %v734, %v732
        %v759 = vpack.c.b16 %v735, %v733
        %v760 = vpack.c.b16 %v738, %v736
        %v761 = vpack.c.b16 %v739, %v737
        %v762 = vpack.c.b16 %v742, %v740
        %v763 = vpack.c.b16 %v743, %v741
        %v764 = vpack.c.b16 %v746, %v744
        %v765 = vpack.c.b16 %v747, %v745
        %v766 = vpack.c.b16 %v750, %v748
        %v767 = vpack.c.b16 %v751, %v749
        %784 = vmatprep.subr.bf16.mxu0 %v753
        %785 = vmatpush1.bf16.msra.mxu0 %v752
        %786 = vmatprep.subr.bf16.mxu0 %v755
        %787 = vmatpush1.bf16.msra.mxu0 %v754
        %788 = vmatprep.subr.bf16.mxu0 %v757
        %789 = vmatpush1.bf16.msra.mxu0 %v756
        %790 = vmatprep.subr.bf16.mxu0 %v759
        %791 = vmatpush1.bf16.msra.mxu0 %v758
        %792 = vmatprep.subr.bf16.mxu0 %v761
        %793 = vmatpush1.bf16.msra.mxu0 %v760
        %794 = vmatprep.subr.bf16.mxu0 %v763
        %795 = vmatpush1.bf16.msra.mxu0 %v762
        %796 = vmatprep.subr.bf16.mxu0 %v765
        %797 = vmatpush1.bf16.msra.mxu0 %v764
        %798 = vmatprep.subr.bf16.mxu0 %v767
        %799 = vmatpush1.bf16.msra.mxu0 %v766
        %800 = vmatprep.subr.bf16.mxu0 0
        %801 = vmatpush1.bf16.msra.mxu0 0
        %802 = vmatprep.subr.bf16.mxu0 0
        %803 = vmatpush1.bf16.msra.mxu0 0
        %804 = vmatprep.subr.bf16.mxu0 0
        %805 = vmatpush1.bf16.msra.mxu0 0
        %806 = vmatprep.subr.bf16.mxu0 0
        %807 = vmatpush1.bf16.msra.mxu0 0
        %808 = vmatprep.subr.bf16.mxu0 0
        %809 = vmatpush1.bf16.msra.mxu0 0
        %810 = vmatprep.subr.bf16.mxu0 0
        %811 = vmatpush1.bf16.msra.mxu0 0
        %812 = vmatprep.subr.bf16.mxu0 0
        %813 = vmatpush1.bf16.msra.mxu0 0
        %814 = vmatprep.subr.bf16.mxu0 0
        %815 = vmatpush1.bf16.msra.mxu0 0
        %816 = vmatprep.mubr.bf16.mxu0 0
        %817 = vmatmul.mubr.bf16.gmra.mrb[0].mxu0 %v666
        %v818 = vpop.f32.mrb[0].mxu0
        %v819 = vadd.f32 %v697, %v818
        %v820 = vpop.f32.mrb[0].mxu0
        %v821 = vadd.f32 %v701, %v820
        %v822 = vpop.f32.mrb[0].mxu0
        %v823 = vadd.f32 %v697, %v822
        %v824 = vpop.f32.mrb[0].mxu0
        %v825 = vadd.f32 %v701, %v824
        %826 = vmatprep.mubr.bf16.mxu0 0
        %827 = vmatmul.mubr.bf16.gmra.mrb[0].mxu0 %v667
        %v828 = vpop.f32.mrb[0].mxu0
        %v829 = vadd.f32 %v697, %v828
        %v830 = vpop.f32.mrb[0].mxu0
        %v831 = vadd.f32 %v701, %v830
        %v832 = vpop.f32.mrb[0].mxu0
        %v833 = vadd.f32 %v697, %v832
        %v834 = vpop.f32.mrb[0].mxu0
        %v835 = vadd.f32 %v701, %v834
        %836 = vmatprep.mubr.bf16.mxu0 0
        %837 = vmatmul.mubr.bf16.gmra.mrb[0].mxu0 %v668
        %v838 = vpop.f32.mrb[0].mxu0
        %v839 = vadd.f32 %v697, %v838
        %v840 = vpop.f32.mrb[0].mxu0
        %v841 = vadd.f32 %v701, %v840
        %v842 = vpop.f32.mrb[0].mxu0
        %v843 = vadd.f32 %v697, %v842
        %v844 = vpop.f32.mrb[0].mxu0
        %v845 = vadd.f32 %v701, %v844
        %846 = vmatprep.mubr.bf16.mxu0 0
        %847 = vmatmul.mubr.bf16.gmra.mrb[0].mxu0 %v669
        %v848 = vpop.f32.mrb[0].mxu0
        %v849 = vadd.f32 %v697, %v848
        %v850 = vpop.f32.mrb[0].mxu0
        %v851 = vadd.f32 %v701, %v850
        %v852 = vpop.f32.mrb[0].mxu0
        %v853 = vadd.f32 %v697, %v852
        %v854 = vpop.f32.mrb[0].mxu0
        %v855 = vadd.f32 %v701, %v854
        %856 = vmatprep.mubr.bf16.mxu0 0
        %857 = vmatmul.mubr.bf16.gmra.mrb[0].mxu0 %v670
        %v858 = vpop.f32.mrb[0].mxu0
        %v859 = vadd.f32 %v697, %v858
        %v860 = vpop.f32.mrb[0].mxu0
        %v861 = vadd.f32 %v701, %v860
        %v862 = vpop.f32.mrb[0].mxu0
        %v863 = vadd.f32 %v697, %v862
        %v864 = vpop.f32.mrb[0].mxu0
        %v865 = vadd.f32 %v701, %v864
        %866 = vmatprep.mubr.bf16.mxu0 0
        %867 = vmatmul.mubr.bf16.gmra.mrb[0].mxu0 %v671
        %v868 = vpop.f32.mrb[0].mxu0
        %v869 = vadd.f32 %v697, %v868
        %v870 = vpop.f32.mrb[0].mxu0
        %v871 = vadd.f32 %v701, %v870
        %v872 = vpop.f32.mrb[0].mxu0
        %v873 = vadd.f32 %v697, %v872
        %v874 = vpop.f32.mrb[0].mxu0
        %v875 = vadd.f32 %v701, %v874
        %876 = vmatprep.mubr.bf16.mxu0 0
        %877 = vmatmul.mubr.bf16.gmra.mrb[0].mxu0 %v672
        %v878 = vpop.f32.mrb[0].mxu0
        %v879 = vadd.f32 %v697, %v878
        %v880 = vpop.f32.mrb[0].mxu0
        %v881 = vadd.f32 %v701, %v880
        %v882 = vpop.f32.mrb[0].mxu0
        %v883 = vadd.f32 %v697, %v882
        %v884 = vpop.f32.mrb[0].mxu0
        %v885 = vadd.f32 %v701, %v884
        %886 = vmatprep.mubr.bf16.mxu0 0
        %887 = vmatmul.mubr.bf16.gmra.mrb[0].mxu0 %v673
        %v888 = vpop.f32.mrb[0].mxu0
        %v889 = vadd.f32 %v697, %v888
        %v890 = vpop.f32.mrb[0].mxu0
        %v891 = vadd.f32 %v701, %v890
        %v892 = vpop.f32.mrb[0].mxu0
        %v893 = vadd.f32 %v697, %v892
        %v894 = vpop.f32.mrb[0].mxu0
        %v895 = vadd.f32 %v701, %v894
        %896 = vmatprep.mubr.bf16.mxu0 0
        %897 = vmatmul.mubr.bf16.gmra.mrb[0].mxu0 %v674
        %v898 = vpop.f32.mrb[0].mxu0
        %v899 = vadd.f32 %v697, %v898
        %v900 = vpop.f32.mrb[0].mxu0
        %v901 = vadd.f32 %v701, %v900
        %v902 = vpop.f32.mrb[0].mxu0
        %v903 = vadd.f32 %v697, %v902
        %v904 = vpop.f32.mrb[0].mxu0
        %v905 = vadd.f32 %v701, %v904
        %906 = vmatprep.mubr.bf16.mxu0 0
        %907 = vmatmul.mubr.bf16.gmra.mrb[0].mxu0 %v675
        %v908 = vpop.f32.mrb[0].mxu0
        %v909 = vadd.f32 %v697, %v908
        %v910 = vpop.f32.mrb[0].mxu0
        %v911 = vadd.f32 %v701, %v910
        %v912 = vpop.f32.mrb[0].mxu0
        %v913 = vadd.f32 %v697, %v912
        %v914 = vpop.f32.mrb[0].mxu0
        %v915 = vadd.f32 %v701, %v914
        %916 = vdwg.mxu0
        %s917 = sld [smem:[#allocation2 + $0x1]]
        %vm918 = vcmp.ge.f32.partialorder %v819, 0.0
        %vm919 = vcmp.ge.f32.partialorder %v821, 0.0
        %vm920 = vcmp.ge.f32.partialorder %v823, 0.0
        %vm921 = vcmp.ge.f32.partialorder %v825, 0.0
        %vm922 = vcmp.ge.f32.partialorder %v829, 0.0
        %vm923 = vcmp.ge.f32.partialorder %v831, 0.0
        %vm924 = vcmp.ge.f32.partialorder %v833, 0.0
        %vm925 = vcmp.ge.f32.partialorder %v835, 0.0
        %vm926 = vcmp.ge.f32.partialorder %v839, 0.0
        %vm927 = vcmp.ge.f32.partialorder %v841, 0.0
        %vm928 = vcmp.ge.f32.partialorder %v843, 0.0
        %vm929 = vcmp.ge.f32.partialorder %v845, 0.0
        %vm930 = vcmp.ge.f32.partialorder %v849, 0.0
        %vm931 = vcmp.ge.f32.partialorder %v851, 0.0
        %vm932 = vcmp.ge.f32.partialorder %v853, 0.0
        %vm933 = vcmp.ge.f32.partialorder %v855, 0.0
        %vm934 = vcmp.ge.f32.partialorder %v859, 0.0
        %vm935 = vcmp.ge.f32.partialorder %v861, 0.0
        %vm936 = vcmp.ge.f32.partialorder %v863, 0.0
        %vm937 = vcmp.ge.f32.partialorder %v865, 0.0
        %vm938 = vcmp.ge.f32.partialorder %v869, 0.0
        %vm939 = vcmp.ge.f32.partialorder %v871, 0.0
        %vm940 = vcmp.ge.f32.partialorder %v873, 0.0
        %vm941 = vcmp.ge.f32.partialorder %v875, 0.0
        %vm942 = vcmp.ge.f32.partialorder %v879, 0.0
        %vm943 = vcmp.ge.f32.partialorder %v881, 0.0
        %vm944 = vcmp.ge.f32.partialorder %v883, 0.0
        %vm945 = vcmp.ge.f32.partialorder %v885, 0.0
        %vm946 = vcmp.ge.f32.partialorder %v889, 0.0
        %vm947 = vcmp.ge.f32.partialorder %v891, 0.0
        %vm948 = vcmp.ge.f32.partialorder %v893, 0.0
        %vm949 = vcmp.ge.f32.partialorder %v895, 0.0
        %vm950 = vcmp.ge.f32.partialorder %v899, 0.0
        %vm951 = vcmp.ge.f32.partialorder %v901, 0.0
        %vm952 = vcmp.ge.f32.partialorder %v903, 0.0
        %vm953 = vcmp.ge.f32.partialorder %v905, 0.0
        %vm954 = vcmp.ge.f32.partialorder %v909, 0.0
        %vm955 = vcmp.ge.f32.partialorder %v911, 0.0
        %vm956 = vcmp.ge.f32.partialorder %v913, 0.0
        %vm957 = vcmp.ge.f32.partialorder %v915, 0.0
        %v958 = vstv %s917
        %v959 = vmul.f32 %v958, %v819
        %v960 = vmul.f32 %v958, %v821
        %v961 = vmul.f32 %v958, %v823
        %v962 = vmul.f32 %v958, %v825
        %v963 = vmul.f32 %v958, %v829
        %v964 = vmul.f32 %v958, %v831
        %v965 = vmul.f32 %v958, %v833
        %v966 = vmul.f32 %v958, %v835
        %v967 = vmul.f32 %v958, %v839
        %v968 = vmul.f32 %v958, %v841
        %v969 = vmul.f32 %v958, %v843
        %v970 = vmul.f32 %v958, %v845
        %v971 = vmul.f32 %v958, %v849
        %v972 = vmul.f32 %v958, %v851
        %v973 = vmul.f32 %v958, %v853
        %v974 = vmul.f32 %v958, %v855
        %v975 = vmul.f32 %v958, %v859
        %v976 = vmul.f32 %v958, %v861
        %v977 = vmul.f32 %v958, %v863
        %v978 = vmul.f32 %v958, %v865
        %v979 = vmul.f32 %v958, %v869
        %v980 = vmul.f32 %v958, %v871
        %v981 = vmul.f32 %v958, %v873
        %v982 = vmul.f32 %v958, %v875
        %v983 = vmul.f32 %v958, %v879
        %v984 = vmul.f32 %v958, %v881
        %v985 = vmul.f32 %v958, %v883
        %v986 = vmul.f32 %v958, %v885
        %v987 = vmul.f32 %v958, %v889
        %v988 = vmul.f32 %v958, %v891
        %v989 = vmul.f32 %v958, %v893
        %v990 = vmul.f32 %v958, %v895
        %v991 = vmul.f32 %v958, %v899
        %v992 = vmul.f32 %v958, %v901
        %v993 = vmul.f32 %v958, %v903
        %v994 = vmul.f32 %v958, %v905
        %v995 = vmul.f32 %v958, %v909
        %v996 = vmul.f32 %v958, %v911
        %v997 = vmul.f32 %v958, %v913
        %v998 = vmul.f32 %v958, %v915
        %v999 = vsel %vm918, %v819, %v959
        %v1000 = vsel %vm919, %v821, %v960
        %v1001 = vsel %vm920, %v823, %v961
        %v1002 = vsel %vm921, %v825, %v962
        %v1003 = vsel %vm922, %v829, %v963
        %v1004 = vsel %vm923, %v831, %v964
        %v1005 = vsel %vm924, %v833, %v965
        %v1006 = vsel %vm925, %v835, %v966
        %v1007 = vsel %vm926, %v839, %v967
        %v1008 = vsel %vm927, %v841, %v968
        %v1009 = vsel %vm928, %v843, %v969
        %v1010 = vsel %vm929, %v845, %v970
        %v1011 = vsel %vm930, %v849, %v971
        %v1012 = vsel %vm931, %v851, %v972
        %v1013 = vsel %vm932, %v853, %v973
        %v1014 = vsel %vm933, %v855, %v974
        %v1015 = vsel %vm934, %v859, %v975
        %v1016 = vsel %vm935, %v861, %v976
        %v1017 = vsel %vm936, %v863, %v977
        %v1018 = vsel %vm937, %v865, %v978
        %v1019 = vsel %vm938, %v869, %v979
        %v1020 = vsel %vm939, %v871, %v980
        %v1021 = vsel %vm940, %v873, %v981
        %v1022 = vsel %vm941, %v875, %v982
        %v1023 = vsel %vm942, %v879, %v983
        %v1024 = vsel %vm943, %v881, %v984
        %v1025 = vsel %vm944, %v883, %v985
        %v1026 = vsel %vm945, %v885, %v986
        %v1027 = vsel %vm946, %v889, %v987
        %v1028 = vsel %vm947, %v891, %v988
        %v1029 = vsel %vm948, %v893, %v989
        %v1030 = vsel %vm949, %v895, %v990
        %v1031 = vsel %vm950, %v899, %v991
        %v1032 = vsel %vm951, %v901, %v992
        %v1033 = vsel %vm952, %v903, %v993
        %v1034 = vsel %vm953, %v905, %v994
        %v1035 = vsel %vm954, %v909, %v995
        %v1036 = vsel %vm955, %v911, %v996
        %v1037 = vsel %vm956, %v913, %v997
        %v1038 = vsel %vm957, %v915, %v998
        %v1039 = vpack.c.bf16 %v1001, %v999
        %v1040 = vpack.c.bf16 %v1002, %v1000
        %v1041 = vpack.c.bf16 %v1005, %v1003
        %v1042 = vpack.c.bf16 %v1006, %v1004
        %v1043 = vpack.c.bf16 %v1009, %v1007
        %v1044 = vpack.c.bf16 %v1010, %v1008
        %v1045 = vpack.c.bf16 %v1013, %v1011
        %v1046 = vpack.c.bf16 %v1014, %v1012
        %v1047 = vpack.c.bf16 %v1017, %v1015
        %v1048 = vpack.c.bf16 %v1018, %v1016
        %v1049 = vpack.c.bf16 %v1021, %v1019
        %v1050 = vpack.c.bf16 %v1022, %v1020
        %v1051 = vpack.c.bf16 %v1025, %v1023
        %v1052 = vpack.c.bf16 %v1026, %v1024
        %v1053 = vpack.c.bf16 %v1029, %v1027
        %v1054 = vpack.c.bf16 %v1030, %v1028
        %v1055 = vpack.c.bf16 %v1033, %v1031
        %v1056 = vpack.c.bf16 %v1034, %v1032
        %v1057 = vpack.c.bf16 %v1037, %v1035
        %v1058 = vpack.c.bf16 %v1038, %v1036
        %v1059 = vld [vmem:[%s6] sm:$0xff]
        %v1060 = vld [vmem:[%s6 + $0x8] sm:$0xff]
        %v1061 = vld [vmem:[%s6 + $0x10] sm:$0xff]
        %v1062 = vld [vmem:[%s6 + $0x18] sm:$0xff]
        %v1063 = vld [vmem:[%s6 + $0x20] sm:$0xff]
        %v1064 = vld [vmem:[%s6 + $0x28] sm:$0xff]
        %v1065 = vld [vmem:[%s6 + $0x30] sm:$0xff]
        %v1066 = vld [vmem:[%s6 + $0x38] sm:$0xff]
        %v1067 = vld [vmem:[%s6 + $0x40] sm:$0xff]
        %v1068 = vld [vmem:[%s6 + $0x48] sm:$0xff]
        %v1069 = vld [vmem:[%s6 + $0x50] sm:$0xff]
        %v1070 = vld [vmem:[%s6 + $0x58] sm:$0xff]
        %v1071 = vld [vmem:[%s6 + $0x60] sm:$0xff]
        %v1072 = vld [vmem:[%s6 + $0x68] sm:$0xff]
        %v1073 = vld [vmem:[%s6 + $0x70] sm:$0xff]
        %v1074 = vld [vmem:[%s6 + $0x78] sm:$0xff]
        %v1075 = vld [vmem:[%s6 + $0x80] sm:$0xff]
        %v1076 = vld [vmem:[%s6 + $0x88] sm:$0xff]
        %v1077 = vld [vmem:[%s6 + $0x90] sm:$0xff]
        %v1078 = vld [vmem:[%s6 + $0x98] sm:$0xff]
        %v1079 = vld [vmem:[%s6 + $0xa0] sm:$0xff]
        %v1080 = vld [vmem:[%s6 + $0xa8] sm:$0xff]
        %v1081 = vld [vmem:[%s6 + $0xb0] sm:$0xff]
        %v1082 = vld [vmem:[%s6 + $0xb8] sm:$0xff]
        %v1083 = vld [vmem:[%s6 + $0xc0] sm:$0xff]
        %v1084 = vld [vmem:[%s6 + $0xc8] sm:$0xff]
        %v1085 = vld [vmem:[%s6 + $0xd0] sm:$0xff]
        %v1086 = vld [vmem:[%s6 + $0xd8] sm:$0xff]
        %v1087 = vld [vmem:[%s6 + $0xe0] sm:$0xff]
        %v1088 = vld [vmem:[%s6 + $0xe8] sm:$0xff]
        %v1089 = vld [vmem:[%s6 + $0xf0] sm:$0xff]
        %v1090 = vld [vmem:[%s6 + $0xf8] sm:$0xff]
        %v1091 = vld [vmem:[%s6 + $0x100] sm:$0xff]
        %v1092 = vld [vmem:[%s6 + $0x108] sm:$0xff]
        %v1093 = vld [vmem:[%s6 + $0x110] sm:$0xff]
        %v1094 = vld [vmem:[%s6 + $0x118] sm:$0xff]
        %v1095 = vld [vmem:[%s6 + $0x120] sm:$0xff]
        %v1096 = vld [vmem:[%s6 + $0x128] sm:$0xff]
        %v1097 = vld [vmem:[%s6 + $0x130] sm:$0xff]
        %v1098 = vld [vmem:[%s6 + $0x138] sm:$0xff]
        %v1099 = vld [vmem:[%s6 + $0x140] sm:$0xff]
        %v1100 = vld [vmem:[%s6 + $0x148] sm:$0xff]
        %v1101 = vld [vmem:[%s6 + $0x150] sm:$0xff]
        %v1102 = vld [vmem:[%s6 + $0x158] sm:$0xff]
        %v1103 = vld [vmem:[%s6 + $0x160] sm:$0xff]
        %v1104 = vld [vmem:[%s6 + $0x168] sm:$0xff]
        %v1105 = vld [vmem:[%s6 + $0x170] sm:$0xff]
        %v1106 = vld [vmem:[%s6 + $0x178] sm:$0xff]
        %v1107 = vld [vmem:[%s6 + $0x180] sm:$0xff]
        %v1108 = vld [vmem:[%s6 + $0x188] sm:$0xff]
        %v1109 = vld [vmem:[%s6 + $0x190] sm:$0xff]
        %v1110 = vld [vmem:[%s6 + $0x198] sm:$0xff]
        %v1111 = vld [vmem:[%s6 + $0x1a0] sm:$0xff]
        %v1112 = vld [vmem:[%s6 + $0x1a8] sm:$0xff]
        %v1113 = vld [vmem:[%s6 + $0x1b0] sm:$0xff]
        %v1114 = vld [vmem:[%s6 + $0x1b8] sm:$0xff]
        %v1115 = vld [vmem:[%s6 + $0x1c0] sm:$0xff]
        %v1116 = vld [vmem:[%s6 + $0x1c8] sm:$0xff]
        %v1117 = vld [vmem:[%s6 + $0x1d0] sm:$0xff]
        %v1118 = vld [vmem:[%s6 + $0x1d8] sm:$0xff]
        %v1119 = vld [vmem:[%s6 + $0x1e0] sm:$0xff]
        %v1120 = vld [vmem:[%s6 + $0x1e8] sm:$0xff]
        %v1121 = vld [vmem:[%s6 + $0x1f0] sm:$0xff]
        %v1122 = vld [vmem:[%s6 + $0x1f8] sm:$0xff]
        %v1123 = vld [vmem:[%s7] sm:$0xf]
        %v1125 = vlaneseq
        %v1126 = vshrl.u32 %v1125, 7
        %v1127 = vsub.s32 0, %v1126
        %v1128 = vrot.slane %v1123, %v1127
        %v1129 = vlaneseq
        %v1130 = vshrl.u32 %v1129, 7
        %v1131 = vsub.s32 1, %v1130
        %v1132 = vrot.slane %v1123, %v1131
        %v1133 = vlaneseq
        %v1134 = vshrl.u32 %v1133, 7
        %v1135 = vsub.s32 2, %v1134
        %v1136 = vrot.slane %v1123, %v1135
        %v1137 = vlaneseq
        %v1138 = vshrl.u32 %v1137, 7
        %v1139 = vsub.s32 3, %v1138
        %v1140 = vrot.slane %v1123, %v1139
        %v1209 = vunpack.c.l.b16 %v1059
        %v1210 = vunpack.c.h.b16 %v1059
        %v1211 = vunpack.c.l.b16 %v1060
        %v1212 = vunpack.c.h.b16 %v1060
        %v1213 = vunpack.c.l.b16 %v1061
        %v1214 = vunpack.c.h.b16 %v1061
        %v1215 = vunpack.c.l.b16 %v1062
        %v1216 = vunpack.c.h.b16 %v1062
        %v1217 = vunpack.c.l.b16 %v1063
        %v1218 = vunpack.c.h.b16 %v1063
        %v1219 = vunpack.c.l.b16 %v1064
        %v1220 = vunpack.c.h.b16 %v1064
        %v1221 = vunpack.c.l.b16 %v1065
        %v1222 = vunpack.c.h.b16 %v1065
        %v1223 = vunpack.c.l.b16 %v1066
        %v1224 = vunpack.c.h.b16 %v1066
        %v1225 = vunpack.c.l.b16 %v1067
        %v1226 = vunpack.c.h.b16 %v1067
        %v1227 = vunpack.c.l.b16 %v1068
        %v1228 = vunpack.c.h.b16 %v1068
        %v1229 = vunpack.c.l.b16 %v1069
        %v1230 = vunpack.c.h.b16 %v1069
        %v1231 = vunpack.c.l.b16 %v1070
        %v1232 = vunpack.c.h.b16 %v1070
        %v1233 = vunpack.c.l.b16 %v1071
        %v1234 = vunpack.c.h.b16 %v1071
        %v1235 = vunpack.c.l.b16 %v1072
        %v1236 = vunpack.c.h.b16 %v1072
        %v1237 = vunpack.c.l.b16 %v1073
        %v1238 = vunpack.c.h.b16 %v1073
        %v1239 = vunpack.c.l.b16 %v1074
        %v1240 = vunpack.c.h.b16 %v1074
        %v1241 = vunpack.c.l.b16 %v1075
        %v1242 = vunpack.c.h.b16 %v1075
        %v1243 = vunpack.c.l.b16 %v1076
        %v1244 = vunpack.c.h.b16 %v1076
        %v1245 = vunpack.c.l.b16 %v1077
        %v1246 = vunpack.c.h.b16 %v1077
        %v1247 = vunpack.c.l.b16 %v1078
        %v1248 = vunpack.c.h.b16 %v1078
        %v1249 = vunpack.c.l.b16 %v1079
        %v1250 = vunpack.c.h.b16 %v1079
        %v1251 = vunpack.c.l.b16 %v1080
        %v1252 = vunpack.c.h.b16 %v1080
        %v1253 = vunpack.c.l.b16 %v1081
        %v1254 = vunpack.c.h.b16 %v1081
        %v1255 = vunpack.c.l.b16 %v1082
        %v1256 = vunpack.c.h.b16 %v1082
        %v1257 = vunpack.c.l.b16 %v1083
        %v1258 = vunpack.c.h.b16 %v1083
        %v1259 = vunpack.c.l.b16 %v1084
        %v1260 = vunpack.c.h.b16 %v1084
        %v1261 = vunpack.c.l.b16 %v1085
        %v1262 = vunpack.c.h.b16 %v1085
        %v1263 = vunpack.c.l.b16 %v1086
        %v1264 = vunpack.c.h.b16 %v1086
        %v1265 = vunpack.c.l.b16 %v1087
        %v1266 = vunpack.c.h.b16 %v1087
        %v1267 = vunpack.c.l.b16 %v1088
        %v1268 = vunpack.c.h.b16 %v1088
        %v1269 = vunpack.c.l.b16 %v1089
        %v1270 = vunpack.c.h.b16 %v1089
        %v1271 = vunpack.c.l.b16 %v1090
        %v1272 = vunpack.c.h.b16 %v1090
        %v1273 = vunpack.c.l.b16 %v1091
        %v1274 = vunpack.c.h.b16 %v1091
        %v1275 = vunpack.c.l.b16 %v1092
        %v1276 = vunpack.c.h.b16 %v1092
        %v1277 = vunpack.c.l.b16 %v1093
        %v1278 = vunpack.c.h.b16 %v1093
        %v1279 = vunpack.c.l.b16 %v1094
        %v1280 = vunpack.c.h.b16 %v1094
        %v1281 = vunpack.c.l.b16 %v1095
        %v1282 = vunpack.c.h.b16 %v1095
        %v1283 = vunpack.c.l.b16 %v1096
        %v1284 = vunpack.c.h.b16 %v1096
        %v1285 = vunpack.c.l.b16 %v1097
        %v1286 = vunpack.c.h.b16 %v1097
        %v1287 = vunpack.c.l.b16 %v1098
        %v1288 = vunpack.c.h.b16 %v1098
        %v1289 = vunpack.c.l.b16 %v1099
        %v1290 = vunpack.c.h.b16 %v1099
        %v1291 = vunpack.c.l.b16 %v1100
        %v1292 = vunpack.c.h.b16 %v1100
        %v1293 = vunpack.c.l.b16 %v1101
        %v1294 = vunpack.c.h.b16 %v1101
        %v1295 = vunpack.c.l.b16 %v1102
        %v1296 = vunpack.c.h.b16 %v1102
        %v1297 = vunpack.c.l.b16 %v1103
        %v1298 = vunpack.c.h.b16 %v1103
        %v1299 = vunpack.c.l.b16 %v1104
        %v1300 = vunpack.c.h.b16 %v1104
        %v1301 = vunpack.c.l.b16 %v1105
        %v1302 = vunpack.c.h.b16 %v1105
        %v1303 = vunpack.c.l.b16 %v1106
        %v1304 = vunpack.c.h.b16 %v1106
        %v1305 = vunpack.c.l.b16 %v1107
        %v1306 = vunpack.c.h.b16 %v1107
        %v1307 = vunpack.c.l.b16 %v1108
        %v1308 = vunpack.c.h.b16 %v1108
        %v1309 = vunpack.c.l.b16 %v1109
        %v1310 = vunpack.c.h.b16 %v1109
        %v1311 = vunpack.c.l.b16 %v1110
        %v1312 = vunpack.c.h.b16 %v1110
        %v1313 = vunpack.c.l.b16 %v1111
        %v1314 = vunpack.c.h.b16 %v1111
        %v1315 = vunpack.c.l.b16 %v1112
        %v1316 = vunpack.c.h.b16 %v1112
        %v1317 = vunpack.c.l.b16 %v1113
        %v1318 = vunpack.c.h.b16 %v1113
        %v1319 = vunpack.c.l.b16 %v1114
        %v1320 = vunpack.c.h.b16 %v1114
        %v1321 = vunpack.c.l.b16 %v1115
        %v1322 = vunpack.c.h.b16 %v1115
        %v1323 = vunpack.c.l.b16 %v1116
        %v1324 = vunpack.c.h.b16 %v1116
        %v1325 = vunpack.c.l.b16 %v1117
        %v1326 = vunpack.c.h.b16 %v1117
        %v1327 = vunpack.c.l.b16 %v1118
        %v1328 = vunpack.c.h.b16 %v1118
        %v1329 = vunpack.c.l.b16 %v1119
        %v1330 = vunpack.c.h.b16 %v1119
        %v1331 = vunpack.c.l.b16 %v1120
        %v1332 = vunpack.c.h.b16 %v1120
        %v1333 = vunpack.c.l.b16 %v1121
        %v1334 = vunpack.c.h.b16 %v1121
        %v1335 = vunpack.c.l.b16 %v1122
        %v1336 = vunpack.c.h.b16 %v1122
        %v1337 = vpack.c.b16 %v1213, %v1209
        %v1338 = vpack.c.b16 %v1214, %v1210
        %v1339 = vpack.c.b16 %v1215, %v1211
        %v1340 = vpack.c.b16 %v1216, %v1212
        %v1341 = vpack.c.b16 %v1221, %v1217
        %v1342 = vpack.c.b16 %v1222, %v1218
        %v1343 = vpack.c.b16 %v1223, %v1219
        %v1344 = vpack.c.b16 %v1224, %v1220
        %v1345 = vpack.c.b16 %v1229, %v1225
        %v1346 = vpack.c.b16 %v1230, %v1226
        %v1347 = vpack.c.b16 %v1231, %v1227
        %v1348 = vpack.c.b16 %v1232, %v1228
        %v1349 = vpack.c.b16 %v1237, %v1233
        %v1350 = vpack.c.b16 %v1238, %v1234
        %v1351 = vpack.c.b16 %v1239, %v1235
        %v1352 = vpack.c.b16 %v1240, %v1236
        %v1353 = vpack.c.b16 %v1245, %v1241
        %v1354 = vpack.c.b16 %v1246, %v1242
        %v1355 = vpack.c.b16 %v1247, %v1243
        %v1356 = vpack.c.b16 %v1248, %v1244
        %v1357 = vpack.c.b16 %v1253, %v1249
        %v1358 = vpack.c.b16 %v1254, %v1250
        %v1359 = vpack.c.b16 %v1255, %v1251
        %v1360 = vpack.c.b16 %v1256, %v1252
        %v1361 = vpack.c.b16 %v1261, %v1257
        %v1362 = vpack.c.b16 %v1262, %v1258
        %v1363 = vpack.c.b16 %v1263, %v1259
        %v1364 = vpack.c.b16 %v1264, %v1260
        %v1365 = vpack.c.b16 %v1269, %v1265
        %v1366 = vpack.c.b16 %v1270, %v1266
        %v1367 = vpack.c.b16 %v1271, %v1267
        %v1368 = vpack.c.b16 %v1272, %v1268
        %v1369 = vpack.c.b16 %v1277, %v1273
        %v1370 = vpack.c.b16 %v1278, %v1274
        %v1371 = vpack.c.b16 %v1279, %v1275
        %v1372 = vpack.c.b16 %v1280, %v1276
        %v1373 = vpack.c.b16 %v1285, %v1281
        %v1374 = vpack.c.b16 %v1286, %v1282
        %v1375 = vpack.c.b16 %v1287, %v1283
        %v1376 = vpack.c.b16 %v1288, %v1284
        %v1377 = vpack.c.b16 %v1293, %v1289
        %v1378 = vpack.c.b16 %v1294, %v1290
        %v1379 = vpack.c.b16 %v1295, %v1291
        %v1380 = vpack.c.b16 %v1296, %v1292
        %v1381 = vpack.c.b16 %v1301, %v1297
        %v1382 = vpack.c.b16 %v1302, %v1298
        %v1383 = vpack.c.b16 %v1303, %v1299
        %v1384 = vpack.c.b16 %v1304, %v1300
        %v1385 = vpack.c.b16 %v1309, %v1305
        %v1386 = vpack.c.b16 %v1310, %v1306
        %v1387 = vpack.c.b16 %v1311, %v1307
        %v1388 = vpack.c.b16 %v1312, %v1308
        %v1389 = vpack.c.b16 %v1317, %v1313
        %v1390 = vpack.c.b16 %v1318, %v1314
        %v1391 = vpack.c.b16 %v1319, %v1315
        %v1392 = vpack.c.b16 %v1320, %v1316
        %v1393 = vpack.c.b16 %v1325, %v1321
        %v1394 = vpack.c.b16 %v1326, %v1322
        %v1395 = vpack.c.b16 %v1327, %v1323
        %v1396 = vpack.c.b16 %v1328, %v1324
        %v1397 = vpack.c.b16 %v1333, %v1329
        %v1398 = vpack.c.b16 %v1334, %v1330
        %v1399 = vpack.c.b16 %v1335, %v1331
        %v1400 = vpack.c.b16 %v1336, %v1332
        %1465 = vmatprep.subr.bf16.mxu0 %v1338
        %1466 = vmatpush1.bf16.msra.mxu0 %v1337
        %1467 = vmatprep.subr.bf16.mxu0 %v1342
        %1468 = vmatpush1.bf16.msra.mxu0 %v1341
        %1469 = vmatprep.subr.bf16.mxu0 %v1346
        %1470 = vmatpush1.bf16.msra.mxu0 %v1345
        %1471 = vmatprep.subr.bf16.mxu0 %v1350
        %1472 = vmatpush1.bf16.msra.mxu0 %v1349
        %1473 = vmatprep.subr.bf16.mxu0 %v1354
        %1474 = vmatpush1.bf16.msra.mxu0 %v1353
        %1475 = vmatprep.subr.bf16.mxu0 %v1358
        %1476 = vmatpush1.bf16.msra.mxu0 %v1357
        %1477 = vmatprep.subr.bf16.mxu0 %v1362
        %1478 = vmatpush1.bf16.msra.mxu0 %v1361
        %1479 = vmatprep.subr.bf16.mxu0 %v1366
        %1480 = vmatpush1.bf16.msra.mxu0 %v1365
        %1481 = vmatprep.subr.bf16.mxu0 %v1370
        %1482 = vmatpush1.bf16.msra.mxu0 %v1369
        %1483 = vmatprep.subr.bf16.mxu0 %v1374
        %1484 = vmatpush1.bf16.msra.mxu0 %v1373
        %1485 = vmatprep.subr.bf16.mxu0 %v1378
        %1486 = vmatpush1.bf16.msra.mxu0 %v1377
        %1487 = vmatprep.subr.bf16.mxu0 %v1382
        %1488 = vmatpush1.bf16.msra.mxu0 %v1381
        %1489 = vmatprep.subr.bf16.mxu0 %v1386
        %1490 = vmatpush1.bf16.msra.mxu0 %v1385
        %1491 = vmatprep.subr.bf16.mxu0 %v1390
        %1492 = vmatpush1.bf16.msra.mxu0 %v1389
        %1493 = vmatprep.subr.bf16.mxu0 %v1394
        %1494 = vmatpush1.bf16.msra.mxu0 %v1393
        %1495 = vmatprep.subr.bf16.mxu0 %v1398
        %1496 = vmatpush1.bf16.msra.mxu0 %v1397
        %1497 = vmatprep.mubr.bf16.mxu0 %v1040
        %1498 = vmatmul.mubr.bf16.gmra.mrb[0].mxu0 %v1039
        %v1499 = vpop.f32.mrb[0].mxu0
        %v1500 = vadd.f32 %v1128, %v1499
        %v1501 = vpop.f32.mrb[0].mxu0
        %v1502 = vadd.f32 %v1132, %v1501
        %v1503 = vpop.f32.mrb[0].mxu0
        %v1504 = vadd.f32 %v1128, %v1503
        %v1505 = vpop.f32.mrb[0].mxu0
        %v1506 = vadd.f32 %v1132, %v1505
        %1507 = vmatprep.mubr.bf16.mxu0 %v1042
        %1508 = vmatmul.mubr.bf16.gmra.mrb[0].mxu0 %v1041
        %v1509 = vpop.f32.mrb[0].mxu0
        %v1510 = vadd.f32 %v1128, %v1509
        %v1511 = vpop.f32.mrb[0].mxu0
        %v1512 = vadd.f32 %v1132, %v1511
        %v1513 = vpop.f32.mrb[0].mxu0
        %v1514 = vadd.f32 %v1128, %v1513
        %v1515 = vpop.f32.mrb[0].mxu0
        %v1516 = vadd.f32 %v1132, %v1515
        %1517 = vmatprep.mubr.bf16.mxu0 %v1044
        %1518 = vmatmul.mubr.bf16.gmra.mrb[0].mxu0 %v1043
        %v1519 = vpop.f32.mrb[0].mxu0
        %v1520 = vadd.f32 %v1128, %v1519
        %v1521 = vpop.f32.mrb[0].mxu0
        %v1522 = vadd.f32 %v1132, %v1521
        %v1523 = vpop.f32.mrb[0].mxu0
        %v1524 = vadd.f32 %v1128, %v1523
        %v1525 = vpop.f32.mrb[0].mxu0
        %v1526 = vadd.f32 %v1132, %v1525
        %1527 = vmatprep.mubr.bf16.mxu0 %v1046
        %1528 = vmatmul.mubr.bf16.gmra.mrb[0].mxu0 %v1045
        %v1529 = vpop.f32.mrb[0].mxu0
        %v1530 = vadd.f32 %v1128, %v1529
        %v1531 = vpop.f32.mrb[0].mxu0
        %v1532 = vadd.f32 %v1132, %v1531
        %v1533 = vpop.f32.mrb[0].mxu0
        %v1534 = vadd.f32 %v1128, %v1533
        %v1535 = vpop.f32.mrb[0].mxu0
        %v1536 = vadd.f32 %v1132, %v1535
        %1537 = vmatprep.mubr.bf16.mxu0 %v1048
        %1538 = vmatmul.mubr.bf16.gmra.mrb[0].mxu0 %v1047
        %v1539 = vpop.f32.mrb[0].mxu0
        %v1540 = vadd.f32 %v1128, %v1539
        %v1541 = vpop.f32.mrb[0].mxu0
        %v1542 = vadd.f32 %v1132, %v1541
        %v1543 = vpop.f32.mrb[0].mxu0
        %v1544 = vadd.f32 %v1128, %v1543
        %v1545 = vpop.f32.mrb[0].mxu0
        %v1546 = vadd.f32 %v1132, %v1545
        %1547 = vmatprep.mubr.bf16.mxu0 %v1050
        %1548 = vmatmul.mubr.bf16.gmra.mrb[0].mxu0 %v1049
        %v1549 = vpop.f32.mrb[0].mxu0
        %v1550 = vadd.f32 %v1128, %v1549
        %v1551 = vpop.f32.mrb[0].mxu0
        %v1552 = vadd.f32 %v1132, %v1551
        %v1553 = vpop.f32.mrb[0].mxu0
        %v1554 = vadd.f32 %v1128, %v1553
        %v1555 = vpop.f32.mrb[0].mxu0
        %v1556 = vadd.f32 %v1132, %v1555
        %1557 = vmatprep.mubr.bf16.mxu0 %v1052
        %1558 = vmatmul.mubr.bf16.gmra.mrb[0].mxu0 %v1051
        %v1559 = vpop.f32.mrb[0].mxu0
        %v1560 = vadd.f32 %v1128, %v1559
        %v1561 = vpop.f32.mrb[0].mxu0
        %v1562 = vadd.f32 %v1132, %v1561
        %v1563 = vpop.f32.mrb[0].mxu0
        %v1564 = vadd.f32 %v1128, %v1563
        %v1565 = vpop.f32.mrb[0].mxu0
        %v1566 = vadd.f32 %v1132, %v1565
        %1567 = vmatprep.mubr.bf16.mxu0 %v1054
        %1568 = vmatmul.mubr.bf16.gmra.mrb[0].mxu0 %v1053
        %v1569 = vpop.f32.mrb[0].mxu0
        %v1570 = vadd.f32 %v1128, %v1569
        %v1571 = vpop.f32.mrb[0].mxu0
        %v1572 = vadd.f32 %v1132, %v1571
        %v1573 = vpop.f32.mrb[0].mxu0
        %v1574 = vadd.f32 %v1128, %v1573
        %v1575 = vpop.f32.mrb[0].mxu0
        %v1576 = vadd.f32 %v1132, %v1575
        %1577 = vmatprep.mubr.bf16.mxu0 %v1056
        %1578 = vmatmul.mubr.bf16.gmra.mrb[0].mxu0 %v1055
        %v1579 = vpop.f32.mrb[0].mxu0
        %v1580 = vadd.f32 %v1128, %v1579
        %v1581 = vpop.f32.mrb[0].mxu0
        %v1582 = vadd.f32 %v1132, %v1581
        %v1583 = vpop.f32.mrb[0].mxu0
        %v1584 = vadd.f32 %v1128, %v1583
        %v1585 = vpop.f32.mrb[0].mxu0
        %v1586 = vadd.f32 %v1132, %v1585
        %1587 = vmatprep.mubr.bf16.mxu0 %v1058
        %1588 = vmatmul.mubr.bf16.gmra.mrb[0].mxu0 %v1057
        %v1589 = vpop.f32.mrb[0].mxu0
        %v1590 = vadd.f32 %v1128, %v1589
        %v1591 = vpop.f32.mrb[0].mxu0
        %v1592 = vadd.f32 %v1132, %v1591
        %v1593 = vpop.f32.mrb[0].mxu0
        %v1594 = vadd.f32 %v1128, %v1593
        %v1595 = vpop.f32.mrb[0].mxu0
        %v1596 = vadd.f32 %v1132, %v1595
        %1597 = vdwg.mxu0
        %1598 = vmatprep.subr.bf16.mxu0 %v1340
        %1599 = vmatpush1.bf16.msra.mxu0 %v1339
        %1600 = vmatprep.subr.bf16.mxu0 %v1344
        %1601 = vmatpush1.bf16.msra.mxu0 %v1343
        %1602 = vmatprep.subr.bf16.mxu0 %v1348
        %1603 = vmatpush1.bf16.msra.mxu0 %v1347
        %1604 = vmatprep.subr.bf16.mxu0 %v1352
        %1605 = vmatpush1.bf16.msra.mxu0 %v1351
        %1606 = vmatprep.subr.bf16.mxu0 %v1356
        %1607 = vmatpush1.bf16.msra.mxu0 %v1355
        %1608 = vmatprep.subr.bf16.mxu0 %v1360
        %1609 = vmatpush1.bf16.msra.mxu0 %v1359
        %1610 = vmatprep.subr.bf16.mxu0 %v1364
        %1611 = vmatpush1.bf16.msra.mxu0 %v1363
        %1612 = vmatprep.subr.bf16.mxu0 %v1368
        %1613 = vmatpush1.bf16.msra.mxu0 %v1367
        %1614 = vmatprep.subr.bf16.mxu0 %v1372
        %1615 = vmatpush1.bf16.msra.mxu0 %v1371
        %1616 = vmatprep.subr.bf16.mxu0 %v1376
        %1617 = vmatpush1.bf16.msra.mxu0 %v1375
        %1618 = vmatprep.subr.bf16.mxu0 %v1380
        %1619 = vmatpush1.bf16.msra.mxu0 %v1379
        %1620 = vmatprep.subr.bf16.mxu0 %v1384
        %1621 = vmatpush1.bf16.msra.mxu0 %v1383
        %1622 = vmatprep.subr.bf16.mxu0 %v1388
        %1623 = vmatpush1.bf16.msra.mxu0 %v1387
        %1624 = vmatprep.subr.bf16.mxu0 %v1392
        %1625 = vmatpush1.bf16.msra.mxu0 %v1391
        %1626 = vmatprep.subr.bf16.mxu0 %v1396
        %1627 = vmatpush1.bf16.msra.mxu0 %v1395
        %1628 = vmatprep.subr.bf16.mxu0 %v1400
        %1629 = vmatpush1.bf16.msra.mxu0 %v1399
        %1630 = vmatprep.mubr.bf16.mxu0 %v1040
        %1631 = vmatmul.mubr.bf16.gmra.mrb[0].mxu0 %v1039
        %v1632 = vpop.f32.mrb[0].mxu0
        %v1633 = vadd.f32 %v1136, %v1632
        %v1634 = vpop.f32.mrb[0].mxu0
        %v1635 = vadd.f32 %v1140, %v1634
        %v1636 = vpop.f32.mrb[0].mxu0
        %v1637 = vadd.f32 %v1136, %v1636
        %v1638 = vpop.f32.mrb[0].mxu0
        %v1639 = vadd.f32 %v1140, %v1638
        %1640 = vmatprep.mubr.bf16.mxu0 %v1042
        %1641 = vmatmul.mubr.bf16.gmra.mrb[0].mxu0 %v1041
        %v1642 = vpop.f32.mrb[0].mxu0
        %v1643 = vadd.f32 %v1136, %v1642
        %v1644 = vpop.f32.mrb[0].mxu0
        %v1645 = vadd.f32 %v1140, %v1644
        %v1646 = vpop.f32.mrb[0].mxu0
        %v1647 = vadd.f32 %v1136, %v1646
        %v1648 = vpop.f32.mrb[0].mxu0
        %v1649 = vadd.f32 %v1140, %v1648
        %1650 = vmatprep.mubr.bf16.mxu0 %v1044
        %1651 = vmatmul.mubr.bf16.gmra.mrb[0].mxu0 %v1043
        %v1652 = vpop.f32.mrb[0].mxu0
        %v1653 = vadd.f32 %v1136, %v1652
        %v1654 = vpop.f32.mrb[0].mxu0
        %v1655 = vadd.f32 %v1140, %v1654
        %v1656 = vpop.f32.mrb[0].mxu0
        %v1657 = vadd.f32 %v1136, %v1656
        %v1658 = vpop.f32.mrb[0].mxu0
        %v1659 = vadd.f32 %v1140, %v1658
        %1660 = vmatprep.mubr.bf16.mxu0 %v1046
        %1661 = vmatmul.mubr.bf16.gmra.mrb[0].mxu0 %v1045
        %v1662 = vpop.f32.mrb[0].mxu0
        %v1663 = vadd.f32 %v1136, %v1662
        %v1664 = vpop.f32.mrb[0].mxu0
        %v1665 = vadd.f32 %v1140, %v1664
        %v1666 = vpop.f32.mrb[0].mxu0
        %v1667 = vadd.f32 %v1136, %v1666
        %v1668 = vpop.f32.mrb[0].mxu0
        %v1669 = vadd.f32 %v1140, %v1668
        %1670 = vmatprep.mubr.bf16.mxu0 %v1048
        %1671 = vmatmul.mubr.bf16.gmra.mrb[0].mxu0 %v1047
        %v1672 = vpop.f32.mrb[0].mxu0
        %v1673 = vadd.f32 %v1136, %v1672
        %v1674 = vpop.f32.mrb[0].mxu0
        %v1675 = vadd.f32 %v1140, %v1674
        %v1676 = vpop.f32.mrb[0].mxu0
        %v1677 = vadd.f32 %v1136, %v1676
        %v1678 = vpop.f32.mrb[0].mxu0
        %v1679 = vadd.f32 %v1140, %v1678
        %1680 = vmatprep.mubr.bf16.mxu0 %v1050
        %1681 = vmatmul.mubr.bf16.gmra.mrb[0].mxu0 %v1049
        %v1682 = vpop.f32.mrb[0].mxu0
        %v1683 = vadd.f32 %v1136, %v1682
        %v1684 = vpop.f32.mrb[0].mxu0
        %v1685 = vadd.f32 %v1140, %v1684
        %v1686 = vpop.f32.mrb[0].mxu0
        %v1687 = vadd.f32 %v1136, %v1686
        %v1688 = vpop.f32.mrb[0].mxu0
        %v1689 = vadd.f32 %v1140, %v1688
        %1690 = vmatprep.mubr.bf16.mxu0 %v1052
        %1691 = vmatmul.mubr.bf16.gmra.mrb[0].mxu0 %v1051
        %v1692 = vpop.f32.mrb[0].mxu0
        %v1693 = vadd.f32 %v1136, %v1692
        %v1694 = vpop.f32.mrb[0].mxu0
        %v1695 = vadd.f32 %v1140, %v1694
        %v1696 = vpop.f32.mrb[0].mxu0
        %v1697 = vadd.f32 %v1136, %v1696
        %v1698 = vpop.f32.mrb[0].mxu0
        %v1699 = vadd.f32 %v1140, %v1698
        %1700 = vmatprep.mubr.bf16.mxu0 %v1054
        %1701 = vmatmul.mubr.bf16.gmra.mrb[0].mxu0 %v1053
        %v1702 = vpop.f32.mrb[0].mxu0
        %v1703 = vadd.f32 %v1136, %v1702
        %v1704 = vpop.f32.mrb[0].mxu0
        %v1705 = vadd.f32 %v1140, %v1704
        %v1706 = vpop.f32.mrb[0].mxu0
        %v1707 = vadd.f32 %v1136, %v1706
        %v1708 = vpop.f32.mrb[0].mxu0
        %v1709 = vadd.f32 %v1140, %v1708
        %1710 = vmatprep.mubr.bf16.mxu0 %v1056
        %1711 = vmatmul.mubr.bf16.gmra.mrb[0].mxu0 %v1055
        %v1712 = vpop.f32.mrb[0].mxu0
        %v1713 = vadd.f32 %v1136, %v1712
        %v1714 = vpop.f32.mrb[0].mxu0
        %v1715 = vadd.f32 %v1140, %v1714
        %v1716 = vpop.f32.mrb[0].mxu0
        %v1717 = vadd.f32 %v1136, %v1716
        %v1718 = vpop.f32.mrb[0].mxu0
        %v1719 = vadd.f32 %v1140, %v1718
        %1720 = vmatprep.mubr.bf16.mxu0 %v1058
        %1721 = vmatmul.mubr.bf16.gmra.mrb[0].mxu0 %v1057
        %v1722 = vpop.f32.mrb[0].mxu0
        %v1723 = vadd.f32 %v1136, %v1722
        %v1724 = vpop.f32.mrb[0].mxu0
        %v1725 = vadd.f32 %v1140, %v1724
        %v1726 = vpop.f32.mrb[0].mxu0
        %v1727 = vadd.f32 %v1136, %v1726
        %v1728 = vpop.f32.mrb[0].mxu0
        %v1729 = vadd.f32 %v1140, %v1728
        %1730 = vdwg.mxu0
        %s1731 = sld [smem:[#allocation2 + $0x2]]
        %vm1732 = vcmp.ge.f32.partialorder %v1500, 0.0
        %vm1733 = vcmp.ge.f32.partialorder %v1502, 0.0
        %vm1734 = vcmp.ge.f32.partialorder %v1633, 0.0
        %vm1735 = vcmp.ge.f32.partialorder %v1635, 0.0
        %vm1736 = vcmp.ge.f32.partialorder %v1504, 0.0
        %vm1737 = vcmp.ge.f32.partialorder %v1506, 0.0
        %vm1738 = vcmp.ge.f32.partialorder %v1637, 0.0
        %vm1739 = vcmp.ge.f32.partialorder %v1639, 0.0
        %vm1740 = vcmp.ge.f32.partialorder %v1510, 0.0
        %vm1741 = vcmp.ge.f32.partialorder %v1512, 0.0
        %vm1742 = vcmp.ge.f32.partialorder %v1643, 0.0
        %vm1743 = vcmp.ge.f32.partialorder %v1645, 0.0
        %vm1744 = vcmp.ge.f32.partialorder %v1514, 0.0
        %vm1745 = vcmp.ge.f32.partialorder %v1516, 0.0
        %vm1746 = vcmp.ge.f32.partialorder %v1647, 0.0
        %vm1747 = vcmp.ge.f32.partialorder %v1649, 0.0
        %vm1748 = vcmp.ge.f32.partialorder %v1520, 0.0
        %vm1749 = vcmp.ge.f32.partialorder %v1522, 0.0
        %vm1750 = vcmp.ge.f32.partialorder %v1653, 0.0
        %vm1751 = vcmp.ge.f32.partialorder %v1655, 0.0
        %vm1752 = vcmp.ge.f32.partialorder %v1524, 0.0
        %vm1753 = vcmp.ge.f32.partialorder %v1526, 0.0
        %vm1754 = vcmp.ge.f32.partialorder %v1657, 0.0
        %vm1755 = vcmp.ge.f32.partialorder %v1659, 0.0
        %vm1756 = vcmp.ge.f32.partialorder %v1530, 0.0
        %vm1757 = vcmp.ge.f32.partialorder %v1532, 0.0
        %vm1758 = vcmp.ge.f32.partialorder %v1663, 0.0
        %vm1759 = vcmp.ge.f32.partialorder %v1665, 0.0
        %vm1760 = vcmp.ge.f32.partialorder %v1534, 0.0
        %vm1761 = vcmp.ge.f32.partialorder %v1536, 0.0
        %vm1762 = vcmp.ge.f32.partialorder %v1667, 0.0
        %vm1763 = vcmp.ge.f32.partialorder %v1669, 0.0
        %vm1764 = vcmp.ge.f32.partialorder %v1540, 0.0
        %vm1765 = vcmp.ge.f32.partialorder %v1542, 0.0
        %vm1766 = vcmp.ge.f32.partialorder %v1673, 0.0
        %vm1767 = vcmp.ge.f32.partialorder %v1675, 0.0
        %vm1768 = vcmp.ge.f32.partialorder %v1544, 0.0
        %vm1769 = vcmp.ge.f32.partialorder %v1546, 0.0
        %vm1770 = vcmp.ge.f32.partialorder %v1677, 0.0
        %vm1771 = vcmp.ge.f32.partialorder %v1679, 0.0
        %vm1772 = vcmp.ge.f32.partialorder %v1550, 0.0
        %vm1773 = vcmp.ge.f32.partialorder %v1552, 0.0
        %vm1774 = vcmp.ge.f32.partialorder %v1683, 0.0
        %vm1775 = vcmp.ge.f32.partialorder %v1685, 0.0
        %vm1776 = vcmp.ge.f32.partialorder %v1554, 0.0
        %vm1777 = vcmp.ge.f32.partialorder %v1556, 0.0
        %vm1778 = vcmp.ge.f32.partialorder %v1687, 0.0
        %vm1779 = vcmp.ge.f32.partialorder %v1689, 0.0
        %vm1780 = vcmp.ge.f32.partialorder %v1560, 0.0
        %vm1781 = vcmp.ge.f32.partialorder %v1562, 0.0
        %vm1782 = vcmp.ge.f32.partialorder %v1693, 0.0
        %vm1783 = vcmp.ge.f32.partialorder %v1695, 0.0
        %vm1784 = vcmp.ge.f32.partialorder %v1564, 0.0
        %vm1785 = vcmp.ge.f32.partialorder %v1566, 0.0
        %vm1786 = vcmp.ge.f32.partialorder %v1697, 0.0
        %vm1787 = vcmp.ge.f32.partialorder %v1699, 0.0
        %vm1788 = vcmp.ge.f32.partialorder %v1570, 0.0
        %vm1789 = vcmp.ge.f32.partialorder %v1572, 0.0
        %vm1790 = vcmp.ge.f32.partialorder %v1703, 0.0
        %vm1791 = vcmp.ge.f32.partialorder %v1705, 0.0
        %vm1792 = vcmp.ge.f32.partialorder %v1574, 0.0
        %vm1793 = vcmp.ge.f32.partialorder %v1576, 0.0
        %vm1794 = vcmp.ge.f32.partialorder %v1707, 0.0
        %vm1795 = vcmp.ge.f32.partialorder %v1709, 0.0
        %vm1796 = vcmp.ge.f32.partialorder %v1580, 0.0
        %vm1797 = vcmp.ge.f32.partialorder %v1582, 0.0
        %vm1798 = vcmp.ge.f32.partialorder %v1713, 0.0
        %vm1799 = vcmp.ge.f32.partialorder %v1715, 0.0
        %vm1800 = vcmp.ge.f32.partialorder %v1584, 0.0
        %vm1801 = vcmp.ge.f32.partialorder %v1586, 0.0
        %vm1802 = vcmp.ge.f32.partialorder %v1717, 0.0
        %vm1803 = vcmp.ge.f32.partialorder %v1719, 0.0
        %vm1804 = vcmp.ge.f32.partialorder %v1590, 0.0
        %vm1805 = vcmp.ge.f32.partialorder %v1592, 0.0
        %vm1806 = vcmp.ge.f32.partialorder %v1723, 0.0
        %vm1807 = vcmp.ge.f32.partialorder %v1725, 0.0
        %vm1808 = vcmp.ge.f32.partialorder %v1594, 0.0
        %vm1809 = vcmp.ge.f32.partialorder %v1596, 0.0
        %vm1810 = vcmp.ge.f32.partialorder %v1727, 0.0
        %vm1811 = vcmp.ge.f32.partialorder %v1729, 0.0
        %v1812 = vstv %s1731
        %v1813 = vmul.f32 %v1812, %v1500
        %v1814 = vmul.f32 %v1812, %v1502
        %v1815 = vmul.f32 %v1812, %v1633
        %v1816 = vmul.f32 %v1812, %v1635
        %v1817 = vmul.f32 %v1812, %v1504
        %v1818 = vmul.f32 %v1812, %v1506
        %v1819 = vmul.f32 %v1812, %v1637
        %v1820 = vmul.f32 %v1812, %v1639
        %v1821 = vmul.f32 %v1812, %v1510
        %v1822 = vmul.f32 %v1812, %v1512
        %v1823 = vmul.f32 %v1812, %v1643
        %v1824 = vmul.f32 %v1812, %v1645
        %v1825 = vmul.f32 %v1812, %v1514
        %v1826 = vmul.f32 %v1812, %v1516
        %v1827 = vmul.f32 %v1812, %v1647
        %v1828 = vmul.f32 %v1812, %v1649
        %v1829 = vmul.f32 %v1812, %v1520
        %v1830 = vmul.f32 %v1812, %v1522
        %v1831 = vmul.f32 %v1812, %v1653
        %v1832 = vmul.f32 %v1812, %v1655
        %v1833 = vmul.f32 %v1812, %v1524
        %v1834 = vmul.f32 %v1812, %v1526
        %v1835 = vmul.f32 %v1812, %v1657
        %v1836 = vmul.f32 %v1812, %v1659
        %v1837 = vmul.f32 %v1812, %v1530
        %v1838 = vmul.f32 %v1812, %v1532
        %v1839 = vmul.f32 %v1812, %v1663
        %v1840 = vmul.f32 %v1812, %v1665
        %v1841 = vmul.f32 %v1812, %v1534
        %v1842 = vmul.f32 %v1812, %v1536
        %v1843 = vmul.f32 %v1812, %v1667
        %v1844 = vmul.f32 %v1812, %v1669
        %v1845 = vmul.f32 %v1812, %v1540
        %v1846 = vmul.f32 %v1812, %v1542
        %v1847 = vmul.f32 %v1812, %v1673
        %v1848 = vmul.f32 %v1812, %v1675
        %v1849 = vmul.f32 %v1812, %v1544
        %v1850 = vmul.f32 %v1812, %v1546
        %v1851 = vmul.f32 %v1812, %v1677
        %v1852 = vmul.f32 %v1812, %v1679
        %v1853 = vmul.f32 %v1812, %v1550
        %v1854 = vmul.f32 %v1812, %v1552
        %v1855 = vmul.f32 %v1812, %v1683
        %v1856 = vmul.f32 %v1812, %v1685
        %v1857 = vmul.f32 %v1812, %v1554
        %v1858 = vmul.f32 %v1812, %v1556
        %v1859 = vmul.f32 %v1812, %v1687
        %v1860 = vmul.f32 %v1812, %v1689
        %v1861 = vmul.f32 %v1812, %v1560
        %v1862 = vmul.f32 %v1812, %v1562
        %v1863 = vmul.f32 %v1812, %v1693
        %v1864 = vmul.f32 %v1812, %v1695
        %v1865 = vmul.f32 %v1812, %v1564
        %v1866 = vmul.f32 %v1812, %v1566
        %v1867 = vmul.f32 %v1812, %v1697
        %v1868 = vmul.f32 %v1812, %v1699
        %v1869 = vmul.f32 %v1812, %v1570
        %v1870 = vmul.f32 %v1812, %v1572
        %v1871 = vmul.f32 %v1812, %v1703
        %v1872 = vmul.f32 %v1812, %v1705
        %v1873 = vmul.f32 %v1812, %v1574
        %v1874 = vmul.f32 %v1812, %v1576
        %v1875 = vmul.f32 %v1812, %v1707
        %v1876 = vmul.f32 %v1812, %v1709
        %v1877 = vmul.f32 %v1812, %v1580
        %v1878 = vmul.f32 %v1812, %v1582
        %v1879 = vmul.f32 %v1812, %v1713
        %v1880 = vmul.f32 %v1812, %v1715
        %v1881 = vmul.f32 %v1812, %v1584
        %v1882 = vmul.f32 %v1812, %v1586
        %v1883 = vmul.f32 %v1812, %v1717
        %v1884 = vmul.f32 %v1812, %v1719
        %v1885 = vmul.f32 %v1812, %v1590
        %v1886 = vmul.f32 %v1812, %v1592
        %v1887 = vmul.f32 %v1812, %v1723
        %v1888 = vmul.f32 %v1812, %v1725
        %v1889 = vmul.f32 %v1812, %v1594
        %v1890 = vmul.f32 %v1812, %v1596
        %v1891 = vmul.f32 %v1812, %v1727
        %v1892 = vmul.f32 %v1812, %v1729
        %v1893 = vsel %vm1732, %v1500, %v1813
        %v1894 = vsel %vm1733, %v1502, %v1814
        %v1895 = vsel %vm1734, %v1633, %v1815
        %v1896 = vsel %vm1735, %v1635, %v1816
        %v1897 = vsel %vm1736, %v1504, %v1817
        %v1898 = vsel %vm1737, %v1506, %v1818
        %v1899 = vsel %vm1738, %v1637, %v1819
        %v1900 = vsel %vm1739, %v1639, %v1820
        %v1901 = vsel %vm1740, %v1510, %v1821
        %v1902 = vsel %vm1741, %v1512, %v1822
        %v1903 = vsel %vm1742, %v1643, %v1823
        %v1904 = vsel %vm1743, %v1645, %v1824
        %v1905 = vsel %vm1744, %v1514, %v1825
        %v1906 = vsel %vm1745, %v1516, %v1826
        %v1907 = vsel %vm1746, %v1647, %v1827
        %v1908 = vsel %vm1747, %v1649, %v1828
        %v1909 = vsel %vm1748, %v1520, %v1829
        %v1910 = vsel %vm1749, %v1522, %v1830
        %v1911 = vsel %vm1750, %v1653, %v1831
        %v1912 = vsel %vm1751, %v1655, %v1832
        %v1913 = vsel %vm1752, %v1524, %v1833
        %v1914 = vsel %vm1753, %v1526, %v1834
        %v1915 = vsel %vm1754, %v1657, %v1835
        %v1916 = vsel %vm1755, %v1659, %v1836
        %v1917 = vsel %vm1756, %v1530, %v1837
        %v1918 = vsel %vm1757, %v1532, %v1838
        %v1919 = vsel %vm1758, %v1663, %v1839
        %v1920 = vsel %vm1759, %v1665, %v1840
        %v1921 = vsel %vm1760, %v1534, %v1841
        %v1922 = vsel %vm1761, %v1536, %v1842
        %v1923 = vsel %vm1762, %v1667, %v1843
        %v1924 = vsel %vm1763, %v1669, %v1844
        %v1925 = vsel %vm1764, %v1540, %v1845
        %v1926 = vsel %vm1765, %v1542, %v1846
        %v1927 = vsel %vm1766, %v1673, %v1847
        %v1928 = vsel %vm1767, %v1675, %v1848
        %v1929 = vsel %vm1768, %v1544, %v1849
        %v1930 = vsel %vm1769, %v1546, %v1850
        %v1931 = vsel %vm1770, %v1677, %v1851
        %v1932 = vsel %vm1771, %v1679, %v1852
        %v1933 = vsel %vm1772, %v1550, %v1853
        %v1934 = vsel %vm1773, %v1552, %v1854
        %v1935 = vsel %vm1774, %v1683, %v1855
        %v1936 = vsel %vm1775, %v1685, %v1856
        %v1937 = vsel %vm1776, %v1554, %v1857
        %v1938 = vsel %vm1777, %v1556, %v1858
        %v1939 = vsel %vm1778, %v1687, %v1859
        %v1940 = vsel %vm1779, %v1689, %v1860
        %v1941 = vsel %vm1780, %v1560, %v1861
        %v1942 = vsel %vm1781, %v1562, %v1862
        %v1943 = vsel %vm1782, %v1693, %v1863
        %v1944 = vsel %vm1783, %v1695, %v1864
        %v1945 = vsel %vm1784, %v1564, %v1865
        %v1946 = vsel %vm1785, %v1566, %v1866
        %v1947 = vsel %vm1786, %v1697, %v1867
        %v1948 = vsel %vm1787, %v1699, %v1868
        %v1949 = vsel %vm1788, %v1570, %v1869
        %v1950 = vsel %vm1789, %v1572, %v1870
        %v1951 = vsel %vm1790, %v1703, %v1871
        %v1952 = vsel %vm1791, %v1705, %v1872
        %v1953 = vsel %vm1792, %v1574, %v1873
        %v1954 = vsel %vm1793, %v1576, %v1874
        %v1955 = vsel %vm1794, %v1707, %v1875
        %v1956 = vsel %vm1795, %v1709, %v1876
        %v1957 = vsel %vm1796, %v1580, %v1877
        %v1958 = vsel %vm1797, %v1582, %v1878
        %v1959 = vsel %vm1798, %v1713, %v1879
        %v1960 = vsel %vm1799, %v1715, %v1880
        %v1961 = vsel %vm1800, %v1584, %v1881
        %v1962 = vsel %vm1801, %v1586, %v1882
        %v1963 = vsel %vm1802, %v1717, %v1883
        %v1964 = vsel %vm1803, %v1719, %v1884
        %v1965 = vsel %vm1804, %v1590, %v1885
        %v1966 = vsel %vm1805, %v1592, %v1886
        %v1967 = vsel %vm1806, %v1723, %v1887
        %v1968 = vsel %vm1807, %v1725, %v1888
        %v1969 = vsel %vm1808, %v1594, %v1889
        %v1970 = vsel %vm1809, %v1596, %v1890
        %v1971 = vsel %vm1810, %v1727, %v1891
        %v1972 = vsel %vm1811, %v1729, %v1892
        %v1973 = vpack.c.bf16 %v1897, %v1893
        %v1974 = vpack.c.bf16 %v1898, %v1894
        %v1975 = vpack.c.bf16 %v1899, %v1895
        %v1976 = vpack.c.bf16 %v1900, %v1896
        %v1977 = vpack.c.bf16 %v1905, %v1901
        %v1978 = vpack.c.bf16 %v1906, %v1902
        %v1979 = vpack.c.bf16 %v1907, %v1903
        %v1980 = vpack.c.bf16 %v1908, %v1904
        %v1981 = vpack.c.bf16 %v1913, %v1909
        %v1982 = vpack.c.bf16 %v1914, %v1910
        %v1983 = vpack.c.bf16 %v1915, %v1911
        %v1984 = vpack.c.bf16 %v1916, %v1912
        %v1985 = vpack.c.bf16 %v1921, %v1917
        %v1986 = vpack.c.bf16 %v1922, %v1918
        %v1987 = vpack.c.bf16 %v1923, %v1919
        %v1988 = vpack.c.bf16 %v1924, %v1920
        %v1989 = vpack.c.bf16 %v1929, %v1925
        %v1990 = vpack.c.bf16 %v1930, %v1926
        %v1991 = vpack.c.bf16 %v1931, %v1927
        %v1992 = vpack.c.bf16 %v1932, %v1928
        %v1993 = vpack.c.bf16 %v1937, %v1933
        %v1994 = vpack.c.bf16 %v1938, %v1934
        %v1995 = vpack.c.bf16 %v1939, %v1935
        %v1996 = vpack.c.bf16 %v1940, %v1936
        %v1997 = vpack.c.bf16 %v1945, %v1941
        %v1998 = vpack.c.bf16 %v1946, %v1942
        %v1999 = vpack.c.bf16 %v1947, %v1943
        %v2000 = vpack.c.bf16 %v1948, %v1944
        %v2001 = vpack.c.bf16 %v1953, %v1949
        %v2002 = vpack.c.bf16 %v1954, %v1950
        %v2003 = vpack.c.bf16 %v1955, %v1951
        %v2004 = vpack.c.bf16 %v1956, %v1952
        %v2005 = vpack.c.bf16 %v1961, %v1957
        %v2006 = vpack.c.bf16 %v1962, %v1958
        %v2007 = vpack.c.bf16 %v1963, %v1959
        %v2008 = vpack.c.bf16 %v1964, %v1960
        %v2009 = vpack.c.bf16 %v1969, %v1965
        %v2010 = vpack.c.bf16 %v1970, %v1966
        %v2011 = vpack.c.bf16 %v1971, %v1967
        %v2012 = vpack.c.bf16 %v1972, %v1968
        %v2013 = vld [vmem:[%s8] sm:$0xf]
        %v2014 = vld [vmem:[%s8 + $0x4] sm:$0xf]
        %v2015 = vld [vmem:[%s8 + $0x8] sm:$0xf]
        %v2016 = vld [vmem:[%s8 + $0xc] sm:$0xf]
        %v2017 = vld [vmem:[%s8 + $0x10] sm:$0xf]
        %v2018 = vld [vmem:[%s8 + $0x14] sm:$0xf]
        %v2019 = vld [vmem:[%s8 + $0x18] sm:$0xf]
        %v2020 = vld [vmem:[%s8 + $0x1c] sm:$0xf]
        %v2021 = vld [vmem:[%s8 + $0x20] sm:$0xf]
        %v2022 = vld [vmem:[%s8 + $0x24] sm:$0xf]
        %v2023 = vld [vmem:[%s8 + $0x28] sm:$0xf]
        %v2024 = vld [vmem:[%s8 + $0x2c] sm:$0xf]
        %v2025 = vld [vmem:[%s8 + $0x30] sm:$0xf]
        %v2026 = vld [vmem:[%s8 + $0x34] sm:$0xf]
        %v2027 = vld [vmem:[%s8 + $0x38] sm:$0xf]
        %v2028 = vld [vmem:[%s8 + $0x3c] sm:$0xf]
        %v2029 = vld [vmem:[%s8 + $0x40] sm:$0xf]
        %v2030 = vld [vmem:[%s8 + $0x44] sm:$0xf]
        %v2031 = vld [vmem:[%s8 + $0x48] sm:$0xf]
        %v2032 = vld [vmem:[%s8 + $0x4c] sm:$0xf]
        %v2033 = vld [vmem:[%s8 + $0x50] sm:$0xf]
        %v2034 = vld [vmem:[%s8 + $0x54] sm:$0xf]
        %v2035 = vld [vmem:[%s8 + $0x58] sm:$0xf]
        %v2036 = vld [vmem:[%s8 + $0x5c] sm:$0xf]
        %v2037 = vld [vmem:[%s8 + $0x60] sm:$0xf]
        %v2038 = vld [vmem:[%s8 + $0x64] sm:$0xf]
        %v2039 = vld [vmem:[%s8 + $0x68] sm:$0xf]
        %v2040 = vld [vmem:[%s8 + $0x6c] sm:$0xf]
        %v2041 = vld [vmem:[%s8 + $0x70] sm:$0xf]
        %v2042 = vld [vmem:[%s8 + $0x74] sm:$0xf]
        %v2043 = vld [vmem:[%s8 + $0x78] sm:$0xf]
        %v2044 = vld [vmem:[%s8 + $0x7c] sm:$0xf]
        %v2045 = vld [vmem:[%s8 + $0x80] sm:$0xf]
        %v2046 = vld [vmem:[%s8 + $0x84] sm:$0xf]
        %v2047 = vld [vmem:[%s8 + $0x88] sm:$0xf]
        %v2048 = vld [vmem:[%s8 + $0x8c] sm:$0xf]
        %v2049 = vld [vmem:[%s8 + $0x90] sm:$0xf]
        %v2050 = vld [vmem:[%s8 + $0x94] sm:$0xf]
        %v2051 = vld [vmem:[%s8 + $0x98] sm:$0xf]
        %v2052 = vld [vmem:[%s8 + $0x9c] sm:$0xf]
        %v2053 = vld [vmem:[%s8 + $0xa0] sm:$0xf]
        %v2054 = vld [vmem:[%s8 + $0xa4] sm:$0xf]
        %v2055 = vld [vmem:[%s8 + $0xa8] sm:$0xf]
        %v2056 = vld [vmem:[%s8 + $0xac] sm:$0xf]
        %v2057 = vld [vmem:[%s8 + $0xb0] sm:$0xf]
        %v2058 = vld [vmem:[%s8 + $0xb4] sm:$0xf]
        %v2059 = vld [vmem:[%s8 + $0xb8] sm:$0xf]
        %v2060 = vld [vmem:[%s8 + $0xbc] sm:$0xf]
        %v2061 = vld [vmem:[%s8 + $0xc0] sm:$0xf]
        %v2062 = vld [vmem:[%s8 + $0xc4] sm:$0xf]
        %v2063 = vld [vmem:[%s8 + $0xc8] sm:$0xf]
        %v2064 = vld [vmem:[%s8 + $0xcc] sm:$0xf]
        %v2065 = vld [vmem:[%s8 + $0xd0] sm:$0xf]
        %v2066 = vld [vmem:[%s8 + $0xd4] sm:$0xf]
        %v2067 = vld [vmem:[%s8 + $0xd8] sm:$0xf]
        %v2068 = vld [vmem:[%s8 + $0xdc] sm:$0xf]
        %v2069 = vld [vmem:[%s8 + $0xe0] sm:$0xf]
        %v2070 = vld [vmem:[%s8 + $0xe4] sm:$0xf]
        %v2071 = vld [vmem:[%s8 + $0xe8] sm:$0xf]
        %v2072 = vld [vmem:[%s8 + $0xec] sm:$0xf]
        %v2073 = vld [vmem:[%s8 + $0xf0] sm:$0xf]
        %v2074 = vld [vmem:[%s8 + $0xf4] sm:$0xf]
        %v2075 = vld [vmem:[%s8 + $0xf8] sm:$0xf]
        %v2076 = vld [vmem:[%s8 + $0xfc] sm:$0xf]
        %v2077 = vld [vmem:[%s9] sm:$0x1]
        %v2079 = vlaneseq
        %v2080 = vshrl.u32 %v2079, 7
        %v2081 = vsub.s32 0, %v2080
        %v2082 = vrot.slane %v2077, %v2081
        %v2148 = vunpack.c.l.b16 %v2013
        %v2149 = vunpack.c.l.b16 %v2014
        %v2150 = vunpack.c.l.b16 %v2015
        %v2151 = vunpack.c.l.b16 %v2016
        %v2152 = vunpack.c.l.b16 %v2017
        %v2153 = vunpack.c.l.b16 %v2018
        %v2154 = vunpack.c.l.b16 %v2019
        %v2155 = vunpack.c.l.b16 %v2020
        %v2156 = vunpack.c.l.b16 %v2021
        %v2157 = vunpack.c.l.b16 %v2022
        %v2158 = vunpack.c.l.b16 %v2023
        %v2159 = vunpack.c.l.b16 %v2024
        %v2160 = vunpack.c.l.b16 %v2025
        %v2161 = vunpack.c.l.b16 %v2026
        %v2162 = vunpack.c.l.b16 %v2027
        %v2163 = vunpack.c.l.b16 %v2028
        %v2164 = vunpack.c.l.b16 %v2029
        %v2165 = vunpack.c.l.b16 %v2030
        %v2166 = vunpack.c.l.b16 %v2031
        %v2167 = vunpack.c.l.b16 %v2032
        %v2168 = vunpack.c.l.b16 %v2033
        %v2169 = vunpack.c.l.b16 %v2034
        %v2170 = vunpack.c.l.b16 %v2035
        %v2171 = vunpack.c.l.b16 %v2036
        %v2172 = vunpack.c.l.b16 %v2037
        %v2173 = vunpack.c.l.b16 %v2038
        %v2174 = vunpack.c.l.b16 %v2039
        %v2175 = vunpack.c.l.b16 %v2040
        %v2176 = vunpack.c.l.b16 %v2041
        %v2177 = vunpack.c.l.b16 %v2042
        %v2178 = vunpack.c.l.b16 %v2043
        %v2179 = vunpack.c.l.b16 %v2044
        %v2180 = vunpack.c.l.b16 %v2045
        %v2181 = vunpack.c.l.b16 %v2046
        %v2182 = vunpack.c.l.b16 %v2047
        %v2183 = vunpack.c.l.b16 %v2048
        %v2184 = vunpack.c.l.b16 %v2049
        %v2185 = vunpack.c.l.b16 %v2050
        %v2186 = vunpack.c.l.b16 %v2051
        %v2187 = vunpack.c.l.b16 %v2052
        %v2188 = vunpack.c.l.b16 %v2053
        %v2189 = vunpack.c.l.b16 %v2054
        %v2190 = vunpack.c.l.b16 %v2055
        %v2191 = vunpack.c.l.b16 %v2056
        %v2192 = vunpack.c.l.b16 %v2057
        %v2193 = vunpack.c.l.b16 %v2058
        %v2194 = vunpack.c.l.b16 %v2059
        %v2195 = vunpack.c.l.b16 %v2060
        %v2196 = vunpack.c.l.b16 %v2061
        %v2197 = vunpack.c.l.b16 %v2062
        %v2198 = vunpack.c.l.b16 %v2063
        %v2199 = vunpack.c.l.b16 %v2064
        %v2200 = vunpack.c.l.b16 %v2065
        %v2201 = vunpack.c.l.b16 %v2066
        %v2202 = vunpack.c.l.b16 %v2067
        %v2203 = vunpack.c.l.b16 %v2068
        %v2204 = vunpack.c.l.b16 %v2069
        %v2205 = vunpack.c.l.b16 %v2070
        %v2206 = vunpack.c.l.b16 %v2071
        %v2207 = vunpack.c.l.b16 %v2072
        %v2208 = vunpack.c.l.b16 %v2073
        %v2209 = vunpack.c.l.b16 %v2074
        %v2210 = vunpack.c.l.b16 %v2075
        %v2211 = vunpack.c.l.b16 %v2076
        %v2212 = vpack.c.b16 %v2149, %v2148
        %v2213 = vpack.c.b16 %v2151, %v2150
        %v2214 = vpack.c.b16 %v2153, %v2152
        %v2215 = vpack.c.b16 %v2155, %v2154
        %v2216 = vpack.c.b16 %v2157, %v2156
        %v2217 = vpack.c.b16 %v2159, %v2158
        %v2218 = vpack.c.b16 %v2161, %v2160
        %v2219 = vpack.c.b16 %v2163, %v2162
        %v2220 = vpack.c.b16 %v2165, %v2164
        %v2221 = vpack.c.b16 %v2167, %v2166
        %v2222 = vpack.c.b16 %v2169, %v2168
        %v2223 = vpack.c.b16 %v2171, %v2170
        %v2224 = vpack.c.b16 %v2173, %v2172
        %v2225 = vpack.c.b16 %v2175, %v2174
        %v2226 = vpack.c.b16 %v2177, %v2176
        %v2227 = vpack.c.b16 %v2179, %v2178
        %v2228 = vpack.c.b16 %v2181, %v2180
        %v2229 = vpack.c.b16 %v2183, %v2182
        %v2230 = vpack.c.b16 %v2185, %v2184
        %v2231 = vpack.c.b16 %v2187, %v2186
        %v2232 = vpack.c.b16 %v2189, %v2188
        %v2233 = vpack.c.b16 %v2191, %v2190
        %v2234 = vpack.c.b16 %v2193, %v2192
        %v2235 = vpack.c.b16 %v2195, %v2194
        %v2236 = vpack.c.b16 %v2197, %v2196
        %v2237 = vpack.c.b16 %v2199, %v2198
        %v2238 = vpack.c.b16 %v2201, %v2200
        %v2239 = vpack.c.b16 %v2203, %v2202
        %v2240 = vpack.c.b16 %v2205, %v2204
        %v2241 = vpack.c.b16 %v2207, %v2206
        %v2242 = vpack.c.b16 %v2209, %v2208
        %v2243 = vpack.c.b16 %v2211, %v2210
        %2276 = vmatprep.subr.bf16.mxu0 0
        %2277 = vmatpush1.bf16.msra.mxu0 %v2212
        %2278 = vmatprep.subr.bf16.mxu0 0
        %2279 = vmatpush1.bf16.msra.mxu0 %v2213
        %2280 = vmatprep.subr.bf16.mxu0 0
        %2281 = vmatpush1.bf16.msra.mxu0 %v2214
        %2282 = vmatprep.subr.bf16.mxu0 0
        %2283 = vmatpush1.bf16.msra.mxu0 %v2215
        %2284 = vmatprep.subr.bf16.mxu0 0
        %2285 = vmatpush1.bf16.msra.mxu0 %v2216
        %2286 = vmatprep.subr.bf16.mxu0 0
        %2287 = vmatpush1.bf16.msra.mxu0 %v2217
        %2288 = vmatprep.subr.bf16.mxu0 0
        %2289 = vmatpush1.bf16.msra.mxu0 %v2218
        %2290 = vmatprep.subr.bf16.mxu0 0
        %2291 = vmatpush1.bf16.msra.mxu0 %v2219
        %2292 = vmatprep.subr.bf16.mxu0 0
        %2293 = vmatpush1.bf16.msra.mxu0 %v2220
        %2294 = vmatprep.subr.bf16.mxu0 0
        %2295 = vmatpush1.bf16.msra.mxu0 %v2221
        %2296 = vmatprep.subr.bf16.mxu0 0
        %2297 = vmatpush1.bf16.msra.mxu0 %v2222
        %2298 = vmatprep.subr.bf16.mxu0 0
        %2299 = vmatpush1.bf16.msra.mxu0 %v2223
        %2300 = vmatprep.subr.bf16.mxu0 0
        %2301 = vmatpush1.bf16.msra.mxu0 %v2224
        %2302 = vmatprep.subr.bf16.mxu0 0
        %2303 = vmatpush1.bf16.msra.mxu0 %v2225
        %2304 = vmatprep.subr.bf16.mxu0 0
        %2305 = vmatpush1.bf16.msra.mxu0 %v2226
        %2306 = vmatprep.subr.bf16.mxu0 0
        %2307 = vmatpush1.bf16.msra.mxu0 %v2227
        %2308 = vmatprep.mubr.bf16.mxu0 %v1974
        %2309 = vmatmul.mubr.bf16.gmra.mrb[0].mxu0 %v1973
        %v2310 = vpop.f32.mrb[0].mxu0
        %v2311 = vadd.f32 %v2082, %v2310
        %v2312 = vpop.f32.mrb[0].mxu0
        %v2313 = vpop.f32.mrb[0].mxu0
        %v2314 = vadd.f32 %v2082, %v2313
        %v2315 = vpop.f32.mrb[0].mxu0
        %2316 = vmatprep.mubr.bf16.mxu0 %v1978
        %2317 = vmatmul.mubr.bf16.gmra.mrb[0].mxu0 %v1977
        %v2318 = vpop.f32.mrb[0].mxu0
        %v2319 = vadd.f32 %v2082, %v2318
        %v2320 = vpop.f32.mrb[0].mxu0
        %v2321 = vpop.f32.mrb[0].mxu0
        %v2322 = vadd.f32 %v2082, %v2321
        %v2323 = vpop.f32.mrb[0].mxu0
        %2324 = vmatprep.mubr.bf16.mxu0 %v1982
        %2325 = vmatmul.mubr.bf16.gmra.mrb[0].mxu0 %v1981
        %v2326 = vpop.f32.mrb[0].mxu0
        %v2327 = vadd.f32 %v2082, %v2326
        %v2328 = vpop.f32.mrb[0].mxu0
        %v2329 = vpop.f32.mrb[0].mxu0
        %v2330 = vadd.f32 %v2082, %v2329
        %v2331 = vpop.f32.mrb[0].mxu0
        %2332 = vmatprep.mubr.bf16.mxu0 %v1986
        %2333 = vmatmul.mubr.bf16.gmra.mrb[0].mxu0 %v1985
        %v2334 = vpop.f32.mrb[0].mxu0
        %v2335 = vadd.f32 %v2082, %v2334
        %v2336 = vpop.f32.mrb[0].mxu0
        %v2337 = vpop.f32.mrb[0].mxu0
        %v2338 = vadd.f32 %v2082, %v2337
        %v2339 = vpop.f32.mrb[0].mxu0
        %2340 = vmatprep.mubr.bf16.mxu0 %v1990
        %2341 = vmatmul.mubr.bf16.gmra.mrb[0].mxu0 %v1989
        %v2342 = vpop.f32.mrb[0].mxu0
        %v2343 = vadd.f32 %v2082, %v2342
        %v2344 = vpop.f32.mrb[0].mxu0
        %v2345 = vpop.f32.mrb[0].mxu0
        %v2346 = vadd.f32 %v2082, %v2345
        %v2347 = vpop.f32.mrb[0].mxu0
        %2348 = vmatprep.mubr.bf16.mxu0 %v1994
        %2349 = vmatmul.mubr.bf16.gmra.mrb[0].mxu0 %v1993
        %v2350 = vpop.f32.mrb[0].mxu0
        %v2351 = vadd.f32 %v2082, %v2350
        %v2352 = vpop.f32.mrb[0].mxu0
        %v2353 = vpop.f32.mrb[0].mxu0
        %v2354 = vadd.f32 %v2082, %v2353
        %v2355 = vpop.f32.mrb[0].mxu0
        %2356 = vmatprep.mubr.bf16.mxu0 %v1998
        %2357 = vmatmul.mubr.bf16.gmra.mrb[0].mxu0 %v1997
        %v2358 = vpop.f32.mrb[0].mxu0
        %v2359 = vadd.f32 %v2082, %v2358
        %v2360 = vpop.f32.mrb[0].mxu0
        %v2361 = vpop.f32.mrb[0].mxu0
        %v2362 = vadd.f32 %v2082, %v2361
        %v2363 = vpop.f32.mrb[0].mxu0
        %2364 = vmatprep.mubr.bf16.mxu0 %v2002
        %2365 = vmatmul.mubr.bf16.gmra.mrb[0].mxu0 %v2001
        %v2366 = vpop.f32.mrb[0].mxu0
        %v2367 = vadd.f32 %v2082, %v2366
        %v2368 = vpop.f32.mrb[0].mxu0
        %v2369 = vpop.f32.mrb[0].mxu0
        %v2370 = vadd.f32 %v2082, %v2369
        %v2371 = vpop.f32.mrb[0].mxu0
        %2372 = vmatprep.mubr.bf16.mxu0 %v2006
        %2373 = vmatmul.mubr.bf16.gmra.mrb[0].mxu0 %v2005
        %v2374 = vpop.f32.mrb[0].mxu0
        %v2375 = vadd.f32 %v2082, %v2374
        %v2376 = vpop.f32.mrb[0].mxu0
        %v2377 = vpop.f32.mrb[0].mxu0
        %v2378 = vadd.f32 %v2082, %v2377
        %v2379 = vpop.f32.mrb[0].mxu0
        %2380 = vmatprep.mubr.bf16.mxu0 %v2010
        %2381 = vmatmul.mubr.bf16.gmra.mrb[0].mxu0 %v2009
        %v2382 = vpop.f32.mrb[0].mxu0
        %v2383 = vadd.f32 %v2082, %v2382
        %v2384 = vpop.f32.mrb[0].mxu0
        %v2385 = vpop.f32.mrb[0].mxu0
        %v2386 = vadd.f32 %v2082, %v2385
        %v2387 = vpop.f32.mrb[0].mxu0
        %2388 = vdwg.mxu0
        %2389 = vmatprep.subr.bf16.mxu0 0
        %2390 = vmatpush1.bf16.msra.mxu0 %v2228
        %2391 = vmatprep.subr.bf16.mxu0 0
        %2392 = vmatpush1.bf16.msra.mxu0 %v2229
        %2393 = vmatprep.subr.bf16.mxu0 0
        %2394 = vmatpush1.bf16.msra.mxu0 %v2230
        %2395 = vmatprep.subr.bf16.mxu0 0
        %2396 = vmatpush1.bf16.msra.mxu0 %v2231
        %2397 = vmatprep.subr.bf16.mxu0 0
        %2398 = vmatpush1.bf16.msra.mxu0 %v2232
        %2399 = vmatprep.subr.bf16.mxu0 0
        %2400 = vmatpush1.bf16.msra.mxu0 %v2233
        %2401 = vmatprep.subr.bf16.mxu0 0
        %2402 = vmatpush1.bf16.msra.mxu0 %v2234
        %2403 = vmatprep.subr.bf16.mxu0 0
        %2404 = vmatpush1.bf16.msra.mxu0 %v2235
        %2405 = vmatprep.subr.bf16.mxu0 0
        %2406 = vmatpush1.bf16.msra.mxu0 %v2236
        %2407 = vmatprep.subr.bf16.mxu0 0
        %2408 = vmatpush1.bf16.msra.mxu0 %v2237
        %2409 = vmatprep.subr.bf16.mxu0 0
        %2410 = vmatpush1.bf16.msra.mxu0 %v2238
        %2411 = vmatprep.subr.bf16.mxu0 0
        %2412 = vmatpush1.bf16.msra.mxu0 %v2239
        %2413 = vmatprep.subr.bf16.mxu0 0
        %2414 = vmatpush1.bf16.msra.mxu0 %v2240
        %2415 = vmatprep.subr.bf16.mxu0 0
        %2416 = vmatpush1.bf16.msra.mxu0 %v2241
        %2417 = vmatprep.subr.bf16.mxu0 0
        %2418 = vmatpush1.bf16.msra.mxu0 %v2242
        %2419 = vmatprep.subr.bf16.mxu0 0
        %2420 = vmatpush1.bf16.msra.mxu0 %v2243
        %2421 = vmatprep.mubr.bf16.mxu0 %v1976
        %2422 = vmatmul.mubr.bf16.gmra.mrb[0].mxu0 %v1975
        %v2423 = vpop.f32.mrb[0].mxu0
        %v2424 = vadd.f32 %v2311, %v2423
        %v2425 = vpop.f32.mrb[0].mxu0
        %v2426 = vpop.f32.mrb[0].mxu0
        %v2427 = vadd.f32 %v2314, %v2426
        %v2428 = vpop.f32.mrb[0].mxu0
        %2429 = vmatprep.mubr.bf16.mxu0 %v1980
        %2430 = vmatmul.mubr.bf16.gmra.mrb[0].mxu0 %v1979
        %v2431 = vpop.f32.mrb[0].mxu0
        %v2432 = vadd.f32 %v2319, %v2431
        %v2433 = vpop.f32.mrb[0].mxu0
        %v2434 = vpop.f32.mrb[0].mxu0
        %v2435 = vadd.f32 %v2322, %v2434
        %v2436 = vpop.f32.mrb[0].mxu0
        %2437 = vmatprep.mubr.bf16.mxu0 %v1984
        %2438 = vmatmul.mubr.bf16.gmra.mrb[0].mxu0 %v1983
        %v2439 = vpop.f32.mrb[0].mxu0
        %v2440 = vadd.f32 %v2327, %v2439
        %v2441 = vpop.f32.mrb[0].mxu0
        %v2442 = vpop.f32.mrb[0].mxu0
        %v2443 = vadd.f32 %v2330, %v2442
        %v2444 = vpop.f32.mrb[0].mxu0
        %2445 = vmatprep.mubr.bf16.mxu0 %v1988
        %2446 = vmatmul.mubr.bf16.gmra.mrb[0].mxu0 %v1987
        %v2447 = vpop.f32.mrb[0].mxu0
        %v2448 = vadd.f32 %v2335, %v2447
        %v2449 = vpop.f32.mrb[0].mxu0
        %v2450 = vpop.f32.mrb[0].mxu0
        %v2451 = vadd.f32 %v2338, %v2450
        %v2452 = vpop.f32.mrb[0].mxu0
        %2453 = vmatprep.mubr.bf16.mxu0 %v1992
        %2454 = vmatmul.mubr.bf16.gmra.mrb[0].mxu0 %v1991
        %v2455 = vpop.f32.mrb[0].mxu0
        %v2456 = vadd.f32 %v2343, %v2455
        %v2457 = vpop.f32.mrb[0].mxu0
        %v2458 = vpop.f32.mrb[0].mxu0
        %v2459 = vadd.f32 %v2346, %v2458
        %v2460 = vpop.f32.mrb[0].mxu0
        %2461 = vmatprep.mubr.bf16.mxu0 %v1996
        %2462 = vmatmul.mubr.bf16.gmra.mrb[0].mxu0 %v1995
        %v2463 = vpop.f32.mrb[0].mxu0
        %v2464 = vadd.f32 %v2351, %v2463
        %v2465 = vpop.f32.mrb[0].mxu0
        %v2466 = vpop.f32.mrb[0].mxu0
        %v2467 = vadd.f32 %v2354, %v2466
        %v2468 = vpop.f32.mrb[0].mxu0
        %2469 = vmatprep.mubr.bf16.mxu0 %v2000
        %2470 = vmatmul.mubr.bf16.gmra.mrb[0].mxu0 %v1999
        %v2471 = vpop.f32.mrb[0].mxu0
        %v2472 = vadd.f32 %v2359, %v2471
        %v2473 = vpop.f32.mrb[0].mxu0
        %v2474 = vpop.f32.mrb[0].mxu0
        %v2475 = vadd.f32 %v2362, %v2474
        %v2476 = vpop.f32.mrb[0].mxu0
        %2477 = vmatprep.mubr.bf16.mxu0 %v2004
        %2478 = vmatmul.mubr.bf16.gmra.mrb[0].mxu0 %v2003
        %v2479 = vpop.f32.mrb[0].mxu0
        %v2480 = vadd.f32 %v2367, %v2479
        %v2481 = vpop.f32.mrb[0].mxu0
        %v2482 = vpop.f32.mrb[0].mxu0
        %v2483 = vadd.f32 %v2370, %v2482
        %v2484 = vpop.f32.mrb[0].mxu0
        %2485 = vmatprep.mubr.bf16.mxu0 %v2008
        %2486 = vmatmul.mubr.bf16.gmra.mrb[0].mxu0 %v2007
        %v2487 = vpop.f32.mrb[0].mxu0
        %v2488 = vadd.f32 %v2375, %v2487
        %v2489 = vpop.f32.mrb[0].mxu0
        %v2490 = vpop.f32.mrb[0].mxu0
        %v2491 = vadd.f32 %v2378, %v2490
        %v2492 = vpop.f32.mrb[0].mxu0
        %2493 = vmatprep.mubr.bf16.mxu0 %v2012
        %2494 = vmatmul.mubr.bf16.gmra.mrb[0].mxu0 %v2011
        %v2495 = vpop.f32.mrb[0].mxu0
        %v2496 = vadd.f32 %v2383, %v2495
        %v2497 = vpop.f32.mrb[0].mxu0
        %v2498 = vpop.f32.mrb[0].mxu0
        %v2499 = vadd.f32 %v2386, %v2498
        %v2500 = vpop.f32.mrb[0].mxu0
        %2501 = vdwg.mxu0
        %vm2502 = vcmask 261120
        %2503 = vst.msk [vmem:[%s375] sm:$0xff] %vm2502, %v2424
        %2504 = vst.msk [vmem:[%s375 + $0x8] sm:$0xff] %vm2502, %v2427
        %2505 = vst.msk [vmem:[%s375 + $0x10] sm:$0xff] %vm2502, %v2432
        %2506 = vst.msk [vmem:[%s375 + $0x18] sm:$0xff] %vm2502, %v2435
        %2507 = vst.msk [vmem:[%s375 + $0x20] sm:$0xff] %vm2502, %v2440
        %2508 = vst.msk [vmem:[%s375 + $0x28] sm:$0xff] %vm2502, %v2443
        %2509 = vst.msk [vmem:[%s375 + $0x30] sm:$0xff] %vm2502, %v2448
        %2510 = vst.msk [vmem:[%s375 + $0x38] sm:$0xff] %vm2502, %v2451
        %2511 = vst.msk [vmem:[%s375 + $0x40] sm:$0xff] %vm2502, %v2456
        %2512 = vst.msk [vmem:[%s375 + $0x48] sm:$0xff] %vm2502, %v2459
        %2513 = vst.msk [vmem:[%s375 + $0x50] sm:$0xff] %vm2502, %v2464
        %2514 = vst.msk [vmem:[%s375 + $0x58] sm:$0xff] %vm2502, %v2467
        %2515 = vst.msk [vmem:[%s375 + $0x60] sm:$0xff] %vm2502, %v2472
        %2516 = vst.msk [vmem:[%s375 + $0x68] sm:$0xff] %vm2502, %v2475
        %2517 = vst.msk [vmem:[%s375 + $0x70] sm:$0xff] %vm2502, %v2480
        %2518 = vst.msk [vmem:[%s375 + $0x78] sm:$0xff] %vm2502, %v2483
        %2519 = vst.msk [vmem:[%s375 + $0x80] sm:$0xff] %vm2502, %v2488
        %2520 = vst.msk [vmem:[%s375 + $0x88] sm:$0xff] %vm2502, %v2491
        %2521 = vst.msk [vmem:[%s375 + $0x90] sm:$0xff] %vm2502, %v2496
        %2522 = vst.msk [vmem:[%s375 + $0x98] sm:$0xff] %vm2502, %v2499
        %s2523 = smul.u32 20, %s22
        %p2524 = scmp.lt.s32.totalorder %s2523, 39
        %s2525 = scalar_select %p2524, %s2523, 39
        %s2526 = smul.addr %s2525, 8
        %s2527 = scalar_lea.vmem %s10, %s2526
        // Predicated region
        $region65: #{decoder_forward.1} parent=59 // pred_check
          %p2528 = pneg %p255
        $region66: #{decoder_forward.1} parent=59 // pred_check_branch
          %2530 = sbr.rel (%p2528) target = $region68
        $region67: #{decoder_forward.1} parent=59 // pred_region
          %s2531 = smul.u32 20, %s22
        $region68: #{decoder_forward.1} parent=59 // pred_fallthru
          _
      $region60: #{decoder_forward.1} parent=5 // pred_fallthru
        _
      %p2532 = scmp.le.s32.totalorder 2, %s17
      // Predicated region
      $region69: #{decoder_forward.1} parent=5 // pred_check
        %p2533 = pneg %p2532
      $region70: #{decoder_forward.1} parent=5 // pred_check_branch
        %2535 = sbr.rel (%p2533) target = $region72
      $region71: #{decoder_forward.1} parent=5 // pred_region
        %s2536 = ssub.s32 %s17, 2
        // Predicated region
        $region73: #{decoder_forward.1} parent=71 // pred_check
          %p2537 = pneg %p261
        $region74: #{decoder_forward.1} parent=71 // pred_check_branch
          %2539 = sbr.rel (%p2537) target = $region76
        $region75: #{decoder_forward.1} parent=71 // pred_region
          %s2540 = smul.u32 20, %s23
          %p2541 = scmp.lt.s32.totalorder %s2540, 39
          %s2542 = scalar_select %p2541, %s2540, 39
          %s2543 = smul.addr %s2542, 8
          %s2544 = scalar_lea.vmem %s10, %s2543
        $region76: #{decoder_forward.1} parent=71 // pred_fallthru
          _
      $region72: #{decoder_forward.1} parent=5 // pred_fallthru
        _
    $region6: #{decoder_forward.1} parent=1 // loop_footer
      %s21 = sadd.s32 1, %s17
    $region7: #{decoder_forward.1} parent=1 // loop_footer_branch
      %16 = sbr.rel target = $region3
    $region8: #{decoder_forward.1} parent=1 // loop_exit
      _
    %2545 = vsyncpa [#allocation3], 1
    %s2546 = scalar_lea.sflag [#allocation3], 1
    %2547 = vsyncpa %s2546, 1

</llo_original>
